<compile_context>
chip_gen: v7x
topology: tpu7x:2x2x1
jax: 0.10.0
libtpu: 0.0.40
codegen_flags: <defaults>
</compile_context>

<pallas_src>
import math

import jax
import jax.numpy as jnp
from jax.experimental import pallas as pl
from jax.experimental.pallas import tpu as pltpu


def _pos_embed_kernel(gt_ref, coords_ref, out_ref):
    """One (feature-block, position-block) tile of the positional encoding.

    gt_ref    : (TF, 2)     f32 VMEM -- gt[f] = [G[0, f], G[1, f]]
    coords_ref: (2, TW)     f32 VMEM -- coords[0] = 2x-1, coords[1] = 2y-1 (flat HW)
    out_ref   : (2, TF, TW) f32 VMEM -- out[0] = sin(proj), out[1] = cos(proj)
    """
    gx = gt_ref[:, 0:1]            # (TF, 1)  broadcast along lanes (once per block)
    gy = gt_ref[:, 1:2]            # (TF, 1)
    cx = coords_ref[0:1, :]        # (1, TW)  broadcast along sublanes (cheap)
    cy = coords_ref[1:2, :]        # (1, TW)

    # Pure VPU multiply-add outer product (K == 2 -> MXU would be wasted).
    proj = (2.0 * math.pi) * (gx * cx + gy * cy)      # (TF, TW) f32

    # Two direct slice stores -- no lane-concatenate temporary.
    out_ref[0, :, :] = jnp.sin(proj)
    out_ref[1, :, :] = jnp.cos(proj)


def _pick_tile(total: int, unit: int, cap: int) -> int:
    """Largest multiple of `unit` that divides `total` and is <= cap.

    Falls back to `total` (full-extent block, always legal) when no such
    tile exists (e.g. `total` not a multiple of `unit`)."""
    if total % unit == 0:
        t = min(cap - cap % unit, total)
        while t >= unit:
            if total % t == 0:
                return t
            t -= unit
    return total


def position_embedding_random(gaussian_matrix: jax.Array, size: int) -> jax.Array:
    """Returns pe of shape (2*num_pos_feats, size, size), float32."""
    num_pos_feats = gaussian_matrix.shape[1]
    f = num_pos_feats
    h = w = size
    hw = h * w

    # ---- tiny O(F) / O(HW) wrapper-side prep (negligible vs O(F*HW) output) ----
    gt = jnp.asarray(gaussian_matrix, jnp.float32).T                  # (F, 2)
    jj = jnp.arange(w, dtype=jnp.float32)
    ii = jnp.arange(h, dtype=jnp.float32)
    cx = 2.0 * (jj + 0.5) / w - 1.0                                   # (W,)
    cy = 2.0 * (ii + 0.5) / h - 1.0                                   # (H,)
    cx_flat = jnp.broadcast_to(cx[None, :], (h, w)).reshape(1, hw)    # row-major flatten
    cy_flat = jnp.broadcast_to(cy[:, None], (h, w)).reshape(1, hw)
    coords = jnp.concatenate([cx_flat, cy_flat], axis=0)              # (2, HW)

    # ---- tile sizes: lane-dense, VMEM-safe, >=2 feature blocks for megacore ----
    tf = _pick_tile(f, 8, 32)        # sublane dim of each output block
    tw = _pick_tile(hw, 128, 4096)   # lane dim of each block (block <= ~1 MiB)
    grid = (f // tf, hw // tw)

    out_cfhw = pl.pallas_call(
        _pos_embed_kernel,
        out_shape=jax.ShapeDtypeStruct((2, f, hw), jnp.float32),
        grid=grid,
        in_specs=[
            pl.BlockSpec((tf, 2), lambda fi, wi: (fi, 0)),    # G^T feature block
            pl.BlockSpec((2, tw), lambda fi, wi: (0, wi)),    # coord strip
        ],
        out_specs=pl.BlockSpec((2, tf, tw), lambda fi, wi: (0, fi, wi)),
        compiler_params=pltpu.CompilerParams(
            dimension_semantics=("parallel", "parallel")),
    )(gt, coords)

    # (2, F, H*W) -> (2F, H, W): pure row-major reinterpretation (free reshape);
    # matches PyTorch's pe.permute(2, 0, 1) given the [sin | cos] channel order.
    return out_cfhw.reshape(2 * f, h, w)


def make_gaussian_matrix(key, num_pos_feats: int = 64, scale=None) -> jax.Array:
    """Mirrors the PyTorch buffer init, including the scale<=0 -> 1.0 guard."""
    if scale is None or scale <= 0.0:
        scale = 1.0
    return scale * jax.random.normal(key, (2, num_pos_feats), dtype=jnp.float32)


def _reference(gaussian_matrix: jax.Array, size: int) -> jax.Array:
    """Pure-JAX reference mirroring the PyTorch module exactly."""
    h = w = size
    grid = jnp.ones((h, w), jnp.float32)
    y_embed = (jnp.cumsum(grid, axis=0) - 0.5) / h
    x_embed = (jnp.cumsum(grid, axis=1) - 0.5) / w
    coords = jnp.stack([x_embed, y_embed], axis=-1)                    # (H, W, 2)
    coords = 2.0 * coords - 1.0
    coords = jnp.matmul(coords, gaussian_matrix,
                        precision=jax.lax.Precision.HIGHEST)           # (H, W, F)
    coords = 2.0 * math.pi * coords
    pe = jnp.concatenate([jnp.sin(coords), jnp.cos(coords)], axis=-1)  # (H, W, 2F)
    return jnp.transpose(pe, (2, 0, 1))


if __name__ == "__main__":
    num_pos_feats = 64
    size = 16

    key = jax.random.PRNGKey(0)
    gaussian_matrix = make_gaussian_matrix(key, num_pos_feats, scale=1.0)

    pe = position_embedding_random(gaussian_matrix, size)
    pe = jax.block_until_ready(pe)

    ref = jax.block_until_ready(_reference(gaussian_matrix, size))

    assert pe.shape == (2 * num_pos_feats, size, size), pe.shape
    assert pe.dtype == jnp.float32
    assert jnp.allclose(pe, ref, atol=1e-5, rtol=1e-5), "mismatch vs reference"

    print("KERNEL_OK")
</pallas_src>

<mosaic_0001>
module attributes {stable_mosaic.version = 11 : i64} {
  func.func @_pos_embed_kernel(%arg0: i32, %arg1: i32, %arg2: memref<32x2xf32, #tpu.memory_space<vmem>>, %arg3: memref<2x256xf32, #tpu.memory_space<vmem>>, %arg4: memref<2x32x256xf32, #tpu.memory_space<vmem>>) attributes {dimension_semantics = [#tpu.dimension_semantics<parallel>, #tpu.dimension_semantics<parallel>], iteration_bounds = array<i64: 2, 1>, scalar_prefetch = 0 : i64, scratch_operands = 0 : i64, tpu.core_type = #tpu.core_type<tc>, window_params = [{transform_indices = @transform_0, window_bounds = array<i64: 32, 2>}, {transform_indices = @transform_1, window_bounds = array<i64: 2, 256>}, {transform_indices = @transform_2, window_bounds = array<i64: 2, 32, 256>}]} {
    %c0 = arith.constant 0 : index
    %c0_0 = arith.constant 0 : index
    %0 = vector.load %arg2[%c0, %c0_0] : memref<32x2xf32, #tpu.memory_space<vmem>>, vector<32x1xf32>
    %c0_1 = arith.constant 0 : index
    %c1 = arith.constant 1 : index
    %1 = vector.load %arg2[%c0_1, %c1] : memref<32x2xf32, #tpu.memory_space<vmem>>, vector<32x1xf32>
    %c0_2 = arith.constant 0 : index
    %c0_3 = arith.constant 0 : index
    %2 = vector.load %arg3[%c0_2, %c0_3] : memref<2x256xf32, #tpu.memory_space<vmem>>, vector<1x256xf32>
    %c1_4 = arith.constant 1 : index
    %c0_5 = arith.constant 0 : index
    %3 = vector.load %arg3[%c1_4, %c0_5] : memref<2x256xf32, #tpu.memory_space<vmem>>, vector<1x256xf32>
    %4 = vector.broadcast %0 : vector<32x1xf32> to vector<32x256xf32>
    %5 = vector.broadcast %2 : vector<1x256xf32> to vector<32x256xf32>
    %6 = arith.mulf %4, %5 : vector<32x256xf32>
    %7 = vector.broadcast %1 : vector<32x1xf32> to vector<32x256xf32>
    %8 = vector.broadcast %3 : vector<1x256xf32> to vector<32x256xf32>
    %9 = arith.mulf %7, %8 : vector<32x256xf32>
    %10 = arith.addf %6, %9 : vector<32x256xf32>
    %cst = arith.constant 6.28318548 : f32
    %11 = vector.broadcast %cst : f32 to vector<32x256xf32>
    %12 = arith.mulf %11, %10 : vector<32x256xf32>
    %13 = math.sin %12 : vector<32x256xf32>
    %c0_6 = arith.constant 0 : index
    %c0_7 = arith.constant 0 : index
    %c0_8 = arith.constant 0 : index
    %14 = vector.load %arg4[%c0_6, %c0_7, %c0_8] : memref<2x32x256xf32, #tpu.memory_space<vmem>>, vector<1x32x256xf32>
    %15 = vector.shape_cast %14 : vector<1x32x256xf32> to vector<32x256xf32>
    %16 = vector.shape_cast %13 : vector<32x256xf32> to vector<1x32x256xf32>
    tpu.vector_store %arg4[%c0_6, %c0_7, %c0_8], %16 {strides = array<i32>} : memref<2x32x256xf32, #tpu.memory_space<vmem>>, vector<1x32x256xf32>,
    %17 = math.cos %12 : vector<32x256xf32>
    %c1_9 = arith.constant 1 : index
    %c0_10 = arith.constant 0 : index
    %c0_11 = arith.constant 0 : index
    %18 = vector.load %arg4[%c1_9, %c0_10, %c0_11] : memref<2x32x256xf32, #tpu.memory_space<vmem>>, vector<1x32x256xf32>
    %19 = vector.shape_cast %18 : vector<1x32x256xf32> to vector<32x256xf32>
    %20 = vector.shape_cast %17 : vector<32x256xf32> to vector<1x32x256xf32>
    tpu.vector_store %arg4[%c1_9, %c0_10, %c0_11], %20 {strides = array<i32>} : memref<2x32x256xf32, #tpu.memory_space<vmem>>, vector<1x32x256xf32>,
    return
  }
  func.func @transform_0(%arg0: i32, %arg1: i32) -> (i32, i32) {
    %c0_i32 = arith.constant 0 : i32
    %c0_i32_0 = arith.constant 0 : i32
    return %arg0, %c0_i32 : i32, i32
  }
  func.func @transform_1(%arg0: i32, %arg1: i32) -> (i32, i32) {
    %c0_i32 = arith.constant 0 : i32
    %c0_i32_0 = arith.constant 0 : i32
    return %c0_i32, %arg1 : i32, i32
  }
  func.func @transform_2(%arg0: i32, %arg1: i32) -> (i32, i32, i32) {
    %c0_i32 = arith.constant 0 : i32
    %c0_i32_0 = arith.constant 0 : i32
    return %c0_i32, %arg0, %arg1 : i32, i32, i32
  }
}

</mosaic_0001>

<llo_original>
// kernel: tpu_custom_call.1
$region0: #{tpu_custom_call.1}
  #allocation0 [shape = 'u32[]', space=smem, size = 0x4, offset = 0x4, fixed_abs, tag = 'smem constant byte address 0x4 - core index']
  #allocation1 [shape = 'u32[144,128]{1,0:T(1,128)}', space=vmem, size = 0x12000, scoped, tag = 'internal scratch']
  #allocation4 [shape = 's32[]', space=sflag, size = 0x4, offset = 0, fixed_abs, tag = 'sflag constant byte address 0x0 - dummy sync flag']
  %s0 = inlined_call_operand.vmem [shape: f32[64,2], index: 0, kind: input, shape index: {}]
  %s1 = inlined_call_operand.vmem [shape: f32[2,256], index: 1, kind: input, shape index: {}]
  %s2 = inlined_call_operand.hbm [shape: f32[2,64,256], index: 2, kind: output, shape index: {}]
  %s3 = sld [smem:[#allocation0]]
  $region41: #{tpu_custom_call.1} parent=0
    _
  %s5 = ssub.s32 1, %s3
  %s6 = scalar_select 0, %s5, %s3
  $region1: #{tpu_custom_call.1} parent=0
    #allocation2 [shape = 'u8[131072]{0}', space=vmem, size = 0x20000, scoped, tag = 'output window, operand 0']
    #allocation3 [shape = 's32[2]{0}', space=sflag, size = 0x8, scoped, tag = 'scoped memory for tpu_custom_call.1']
    %7 = vsyncpa [#allocation3], 0
    %s8 = scalar_lea.sflag [#allocation3], 1
    %9 = vsyncpa %s8, 0
    loop: start=0, step=1, limit=4
    $region2: #{tpu_custom_call.1} parent=1 // loop_pre_header
      _
    $region3: #{tpu_custom_call.1} parent=1 // loop_header
      %s11 = sphi 0, %s15
      %p12 = scmp.ge.s32.totalorder %s11, 4
      %s18 = sphi 0, %s30
      %s19 = sphi 0, %s26
      %s20 = sphi 0, %s18
      %s21 = sphi 0, %s19
      %s22 = sphi 0, %s20
      %s23 = sphi 0, %s21
      %s33 = sphi 0, %s35
      %s36 = sphi 0, %s33
      %s37 = sphi 0, %s36
      %s53 = sphi 0, %s37
      %s59 = sphi 0, %s61
      %s62 = sphi 0, %s59
      %s63 = sphi 0, %s62
      %s79 = sphi 0, %s63
      %s87 = sphi 0, %s89
      %s90 = sphi 0, %s87
      %s91 = sphi 0, %s90
      %s107 = sphi 0, %s91
    $region4: #{tpu_custom_call.1} parent=1 // loop_header_branch
      %14 = sbr.rel (%p12) target = $region8
    $region5: #{tpu_custom_call.1} parent=1 // loop_body
      %s16 = ssub.s32 %s11, 1
      %s17 = ssub.s32 %s11, 2
      %s24 = sadd.s32 1, %s19
      %p25 = scmp.ge.s32.totalorder %s24, 1
      %s26 = scalar_select %p25, 0, %s24
      %s27 = sadd.s32 1, %s18
      %s28 = scalar_select %p25, %s27, %s18
      %p29 = scmp.ge.s32.totalorder %s28, 2
      %s30 = scalar_select %p29, 0, %s28
      %s31 = ssub.s32 %s18, %s30
      %p32 = scmp.eq.s32.totalorder %s31, 0
      %s34 = sadd.s32 %s33, 1
      %s35 = scalar_select %p32, %s33, %s34
      %p38 = pneg %p32
      %p39 = scmp.eq.s32.totalorder %s11, 1
      %p40 = por %p38, %p39
      %p41 = scmp.ne.s32.totalorder %s33, %s36
      %p42 = scmp.eq.s32.totalorder %s11, 0
      %p43 = por %p41, %p42
      %p44 = scmp.ne.s32.totalorder %s33, %s36
      %p45 = scmp.eq.s32.totalorder %s16, 1
      %p46 = por %p44, %p45
      %p47 = scmp.ne.s32.totalorder %s36, %s37
      %p48 = scmp.eq.s32.totalorder %s16, 0
      %p49 = por %p47, %p48
      %p50 = scmp.ne.s32.totalorder %s36, %s37
      %p51 = scmp.eq.s32.totalorder %s17, 1
      %p52 = por %p50, %p51
      %p54 = scmp.ne.s32.totalorder %s37, %s53
      %p55 = scmp.eq.s32.totalorder %s17, 0
      %p56 = por %p54, %p55
      %s57 = ssub.s32 %s19, %s26
      %p58 = scmp.eq.s32.totalorder %s57, 0
      %s60 = sadd.s32 %s59, 1
      %s61 = scalar_select %p58, %s59, %s60
      %p64 = pneg %p58
      %p65 = scmp.eq.s32.totalorder %s11, 1
      %p66 = por %p64, %p65
      %p67 = scmp.ne.s32.totalorder %s59, %s62
      %p68 = scmp.eq.s32.totalorder %s11, 0
      %p69 = por %p67, %p68
      %p70 = scmp.ne.s32.totalorder %s59, %s62
      %p71 = scmp.eq.s32.totalorder %s16, 1
      %p72 = por %p70, %p71
      %p73 = scmp.ne.s32.totalorder %s62, %s63
      %p74 = scmp.eq.s32.totalorder %s16, 0
      %p75 = por %p73, %p74
      %p76 = scmp.ne.s32.totalorder %s62, %s63
      %p77 = scmp.eq.s32.totalorder %s17, 1
      %p78 = por %p76, %p77
      %p80 = scmp.ne.s32.totalorder %s63, %s79
      %p81 = scmp.eq.s32.totalorder %s17, 0
      %p82 = por %p80, %p81
      %s83 = ssub.s32 %s18, %s30
      %s84 = ssub.s32 %s19, %s26
      %s85 = sor.u32 %s83, %s84
      %p86 = scmp.eq.s32.totalorder %s85, 0
      %s88 = sadd.s32 %s87, 1
      %s89 = scalar_select %p86, %s87, %s88
      %p92 = pneg %p86
      %p93 = scmp.eq.s32.totalorder %s11, 1
      %p94 = por %p92, %p93
      %p95 = scmp.ne.s32.totalorder %s87, %s90
      %p96 = scmp.eq.s32.totalorder %s11, 0
      %p97 = por %p95, %p96
      %p98 = scmp.ne.s32.totalorder %s87, %s90
      %p99 = scmp.eq.s32.totalorder %s16, 1
      %p100 = por %p98, %p99
      %p101 = scmp.ne.s32.totalorder %s90, %s91
      %p102 = scmp.eq.s32.totalorder %s16, 0
      %p103 = por %p101, %p102
      %p104 = scmp.ne.s32.totalorder %s90, %s91
      %p105 = scmp.eq.s32.totalorder %s17, 1
      %p106 = por %p104, %p105
      %p108 = scmp.ne.s32.totalorder %s91, %s107
      %p109 = scmp.eq.s32.totalorder %s17, 0
      %p110 = por %p108, %p109
      %p111 = scmp.le.s32.totalorder 1, %s11
      %p112 = scmp.lt.s32.totalorder %s11, 3
      %p113 = pnand %p111, %p112
      %p114 = pneg %p113
      // Predicated region
      $region9: #{tpu_custom_call.1} parent=5 // pred_check
        _
      $region10: #{tpu_custom_call.1} parent=5 // pred_check_branch
        %116 = sbr.rel (%p113) target = $region12
      $region11: #{tpu_custom_call.1} parent=5 // pred_region
        %s117 = ssub.s32 %s11, 1
        // Predicated region
        $region13: #{tpu_custom_call.1} parent=11 // pred_check
          %p118 = pneg %p75
        $region14: #{tpu_custom_call.1} parent=11 // pred_check_branch
          %120 = sbr.rel (%p118) target = $region16
        $region15: #{tpu_custom_call.1} parent=11 // pred_region
          %s121 = smul.u32 2, %s21
          %p122 = scmp.lt.s32.totalorder %s121, 1
          %s123 = scalar_select %p122, %s121, 1
          %s124 = smul.addr %s123, 2
          %s125 = scalar_lea.vmem %s1, %s124
          %s126 = smul.u32 2, %s21
        $region16: #{tpu_custom_call.1} parent=11 // pred_fallthru
          _
      $region12: #{tpu_custom_call.1} parent=5 // pred_fallthru
        _
      %p127 = scmp.lt.s32.totalorder %s11, 2
      // Predicated region
      $region17: #{tpu_custom_call.1} parent=5 // pred_check
        %p128 = pneg %p127
      $region18: #{tpu_custom_call.1} parent=5 // pred_check_branch
        %130 = sbr.rel (%p128) target = $region20
      $region19: #{tpu_custom_call.1} parent=5 // pred_region
        // Predicated region
        $region21: #{tpu_custom_call.1} parent=19 // pred_check
          %p131 = pneg %p43
        $region22: #{tpu_custom_call.1} parent=19 // pred_check_branch
          %133 = sbr.rel (%p131) target = $region24
        $region23: #{tpu_custom_call.1} parent=19 // pred_region
          %s134 = smul.u32 4, %s18
          %p135 = scmp.lt.s32.totalorder %s134, 7
          %s136 = scalar_select %p135, %s134, 7
          %s137 = smul.addr %s136, 8
          %s138 = scalar_lea.vmem %s0, %s137
          %s139 = smul.u32 4, %s18
        $region24: #{tpu_custom_call.1} parent=19 // pred_fallthru
          _
      $region20: #{tpu_custom_call.1} parent=5 // pred_fallthru
        _
      %p140 = scmp.le.s32.totalorder 1, %s11
      %p141 = scmp.lt.s32.totalorder %s11, 3
      %p142 = pnand %p140, %p141
      %p143 = pneg %p142
      // Predicated region
      $region25: #{tpu_custom_call.1} parent=5 // pred_check
        _
      $region26: #{tpu_custom_call.1} parent=5 // pred_check_branch
        %145 = sbr.rel (%p142) target = $region28
      $region27: #{tpu_custom_call.1} parent=5 // pred_region
        %s146 = ssub.s32 %s11, 1
        %s147 = smul.u32 4, %s20
        %p148 = scmp.lt.s32.totalorder %s147, 7
        %s149 = scalar_select %p148, %s147, 7
        %s150 = smul.addr %s149, 8
        %s151 = scalar_lea.vmem %s0, %s150
        %p152 = pneg %p49
        %p153 = pneg %p46
        %s154 = smul.u32 2, %s21
        %p155 = scmp.lt.s32.totalorder %s154, 1
        %s156 = scalar_select %p155, %s154, 1
        %s157 = smul.addr %s156, 2
        %s158 = scalar_lea.vmem %s1, %s157
        %p159 = pneg %p75
        %p160 = pneg %p72
        %p161 = pneg %p103
        %p162 = pneg %p100
        %s163 = sand.u32 %s90, 1
        %s164 = scalar_lea.sflag [#allocation3], %s163
        %s165 = sand.u32 %s90, 1
        %s166 = smul.addr %s165, 128
        %s167 = scalar_lea.vmem [#allocation2], %s166
        %s168 = smul.u32 4, %s20
        %p169 = scmp.lt.s32.totalorder %s168, 7
        %s170 = scalar_select %p169, %s168, 7
        %s171 = smul.addr %s170, 8
        %s172 = scalar_lea.vmem %s0, %s171
        %s173 = smul.u32 4, %s20
        %s174 = smul.u32 2, %s21
        %p175 = scmp.lt.s32.totalorder %s174, 1
        %s176 = scalar_select %p175, %s174, 1
        %s177 = smul.addr %s176, 2
        %s178 = scalar_lea.vmem %s1, %s177
        %s179 = smul.u32 2, %s21
        %s180 = smul.u32 4, %s20
        %s181 = smul.u32 2, %s21
        %v182 = vld [vmem:[%s172] sm:$0xff]
        %v183 = vld [vmem:[%s172 + $0x8] sm:$0xff]
        %v184 = vld [vmem:[%s172 + $0x10] sm:$0xff]
        %v185 = vld [vmem:[%s172 + $0x18] sm:$0xff]
        %v186 = vld [vmem:[%s178] ss:$2 sm:$0x3]
        %s187 = scalar_lea.vmem %s178, 1
        %v188 = vld [vmem:[%s187] ss:$2 sm:$0x3]
        %190 = vset.pattern.permute.xlu0 0
        %191 = vperm.xlu0 %190, %v182
        %v192 = vpop.permute.xlu0 %191
        %195 = vset.pattern.permute.xlu0 0
        %196 = vperm.xlu0 %195, %v183
        %v197 = vpop.permute.xlu0 %196
        %200 = vset.pattern.permute.xlu0 0
        %201 = vperm.xlu0 %200, %v184
        %v202 = vpop.permute.xlu0 %201
        %205 = vset.pattern.permute.xlu0 0
        %206 = vperm.xlu0 %205, %v185
        %v207 = vpop.permute.xlu0 %206
        %v210 = vlaneseq
        %v211 = vshrl.u32 %v210, 7
        %v212 = vsub.s32 0, %v211
        %v213 = vrot.slane %v186, %v212
        %v214 = vlaneseq
        %v215 = vshrl.u32 %v214, 7
        %v216 = vsub.s32 1, %v215
        %v217 = vrot.slane %v186, %v216
        %v220 = vmul.f32 %v192, %v213
        %v221 = vmul.f32 %v192, %v217
        %v222 = vmul.f32 %v197, %v213
        %v223 = vmul.f32 %v197, %v217
        %v224 = vmul.f32 %v202, %v213
        %v225 = vmul.f32 %v202, %v217
        %v226 = vmul.f32 %v207, %v213
        %v227 = vmul.f32 %v207, %v217
        %228 = vset.pattern.permute.xlu0 1
        %229 = vperm.xlu0 %228, %v182
        %v230 = vpop.permute.xlu0 %229
        %232 = vset.pattern.permute.xlu0 1
        %233 = vperm.xlu0 %232, %v183
        %v234 = vpop.permute.xlu0 %233
        %236 = vset.pattern.permute.xlu0 1
        %237 = vperm.xlu0 %236, %v184
        %v238 = vpop.permute.xlu0 %237
        %240 = vset.pattern.permute.xlu0 1
        %241 = vperm.xlu0 %240, %v185
        %v242 = vpop.permute.xlu0 %241
        %v245 = vlaneseq
        %v246 = vshrl.u32 %v245, 7
        %v247 = vsub.s32 0, %v246
        %v248 = vrot.slane %v188, %v247
        %v249 = vlaneseq
        %v250 = vshrl.u32 %v249, 7
        %v251 = vsub.s32 1, %v250
        %v252 = vrot.slane %v188, %v251
        %v255 = vmul.f32 %v230, %v248
        %v256 = vmul.f32 %v230, %v252
        %v257 = vmul.f32 %v234, %v248
        %v258 = vmul.f32 %v234, %v252
        %v259 = vmul.f32 %v238, %v248
        %v260 = vmul.f32 %v238, %v252
        %v261 = vmul.f32 %v242, %v248
        %v262 = vmul.f32 %v242, %v252
        %v263 = vadd.f32 %v220, %v255
        %v264 = vadd.f32 %v221, %v256
        %v265 = vadd.f32 %v222, %v257
        %v266 = vadd.f32 %v223, %v258
        %v267 = vadd.f32 %v224, %v259
        %v268 = vadd.f32 %v225, %v260
        %v269 = vadd.f32 %v226, %v261
        %v270 = vadd.f32 %v227, %v262
        %v271 = vmul.f32 %v263, 6.2831855
        %v272 = vmul.f32 %v264, 6.2831855
        %v273 = vmul.f32 %v265, 6.2831855
        %v274 = vmul.f32 %v266, 6.2831855
        %v275 = vmul.f32 %v267, 6.2831855
        %v276 = vmul.f32 %v268, 6.2831855
        %v277 = vmul.f32 %v269, 6.2831855
        %v278 = vmul.f32 %v270, 6.2831855
        %v279 = vand.u32 2147483647, %v271
        %vm280 = vcmp.le.f32.partialorder %v279, 0.7853982
        %vm281 = vcmp.lt.s32.totalorder %v271, 0
        %v282 = vand.u32 %v271, 2139095040
        %v283 = vshrl.u32 %v282, 23
        %v284 = vsub.s32 %v283, 127
        %v285 = vand.u32 2147483647, %v271
        %v286 = vand.u32 %v285, 8388607
        %v287 = vor.u32 %v286, 8388608
        %v288 = vsub.s32 0, %v287
        %v289 = vadd.s32 %v284, 1
        %vm290 = vcmp.gt.s32.totalorder %v289, 0
        %v291 = vsel %vm290, %v289, 0
        %v292 = vshrl.u32 %v291, 5
        %v293 = vand.u32 %v291, 31
        %v294 = vsub.s32 32, %v293
        %v295 = vshrl.u32 683565275, %v294
        %v296 = vshll.u32 683565275, %v293
        %v297 = vshrl.u32 2475754826, %v294
        %v298 = vor.u32 %v296, %v297
        %v299 = vshll.u32 2475754826, %v293
        %v300 = vshrl.u32 2131351028, %v294
        %v301 = vor.u32 %v299, %v300
        %v302 = vshll.u32 2131351028, %v293
        %v303 = vshrl.u32 2102212464, %v294
        %v304 = vor.u32 %v302, %v303
        %v305 = vshll.u32 2102212464, %v293
        %v306 = vshrl.u32 920167782, %v294
        %v307 = vor.u32 %v305, %v306
        %v308 = vshll.u32 920167782, %v293
        %v309 = vshrl.u32 1326507024, %v294
        %v310 = vor.u32 %v308, %v309
        %vm311 = vcmp.lt.s32.totalorder %v292, 1
        %vm312 = vcmp.lt.s32.totalorder %v292, 2
        %vm313 = vcmp.lt.s32.totalorder %v292, 3
        %vm314 = vcmp.lt.s32.totalorder %v292, 4
        %v315 = vsel %vm311, %v295, %v298
        %v316 = vsel %vm314, %v304, 2102212464
        %v317 = vsel %vm313, %v301, %v316
        %v318 = vsel %vm312, %v315, %v317
        %v319 = vsel %vm311, %v298, %v301
        %v320 = vsel %vm314, %v307, 920167782
        %v321 = vsel %vm313, %v304, %v320
        %v322 = vsel %vm312, %v319, %v321
        %v323 = vsel %vm311, %v301, %v304
        %v324 = vsel %vm314, %v310, 1326507024
        %v325 = vsel %vm313, %v307, %v324
        %v326 = vsel %vm312, %v323, %v325
        %v327 = vshll.u32 %v287, 8
        %v328 = vmul.u32.u64.compose %v327, %v326
        %v329 = vextract.low.u32 %v328
        %v330 = vextract.high.u32 %v328
        %v331 = vmul.u32.u64.compose %v327, %v322
        %v332 = vextract.low.u32 %v331
        %v333 = vextract.high.u32 %v331
        %v334 = vmul.u32 %v327, %v318
        %v335 = vadd.s32 %v330, %v332
        %vm336 = vc.u32 %v330, %v332
        %v337 = vadd.s32 %v333, 1
        %v338 = vsel %vm336, %v337, %v333
        %v339 = vadd.s32 %v334, %v338
        %v340 = vadd.s32 %v339, 536870912
        %v341 = vshrl.u32 %v340, 30
        %v342 = vshll.u32 %v341, 30
        %v343 = vsub.s32 %v339, %v342
        %vm344 = vcmp.lt.s32.totalorder %v343, 0
        %v345 = vsub.s32 0, %v343
        %v346 = vsel %vm344, %v345, %v343
        %v347 = vclz %v346
        %v348 = vsub.s32 %v347, 2
        %vm349 = vcmp.gt.s32.totalorder 0, %v348
        %v350 = vsel %vm349, 0, %v348
        %v351 = vsub.s32 32, %v350
        %v352 = vshll.u32 %v343, %v350
        %v353 = vshrl.u32 %v335, %v351
        %v354 = vor.u32 %v352, %v353
        %v355 = vsub.s32 4294967266, %v350
        %v356 = vadd.s32 %v355, 127
        %v357 = vshll.u32 %v356, 23
        %v358 = vor.u32 4788187, %v357
        %v359 = vand.u32 2147483647, %v358
        %v361 = vcvt.s32.f32 %v354
        %v362 = vmul.f32 %v361, %v359
        %v363 = vxor.u32 %v362, 2147483648
        %v364 = vsel %vm281, %v363, %v362
        %v365 = vsub.s32 4, %v341
        %v366 = vsel %vm281, %v365, %v341
        %v367 = vsel %vm280, %v271, %v364
        %v368 = vsel %vm280, 0, %v366
        %v369 = vcosq.f32.pop %v367
        %v370 = vsinq.f32.pop %v367
        %vm371 = vweird.f32 %v271
        %v372 = vadd.s32 %v368, 3
        %v373 = vand.u32 %v372, 3
        %vm374 = vcmp.lt.s32.totalorder %v373, 2
        %vm375 = vcmp.eq.s32.totalorder %v373, 0
        %v376 = vxor.u32 %v370, 2147483648
        %v377 = vsel %vm375, %v369, %v376
        %vm378 = vcmp.eq.s32.totalorder %v373, 2
        %v379 = vxor.u32 %v369, 2147483648
        %v380 = vsel %vm378, %v379, %v370
        %v381 = vsel %vm374, %v377, %v380
        %v382 = vsel %vm371, nan, %v381
        %v383 = vand.u32 2147483647, %v272
        %vm384 = vcmp.le.f32.partialorder %v383, 0.7853982
        %vm385 = vcmp.lt.s32.totalorder %v272, 0
        %v386 = vand.u32 %v272, 2139095040
        %v387 = vshrl.u32 %v386, 23
        %v388 = vsub.s32 %v387, 127
        %v389 = vand.u32 2147483647, %v272
        %v390 = vand.u32 %v389, 8388607
        %v391 = vor.u32 %v390, 8388608
        %v392 = vsub.s32 0, %v391
        %v393 = vadd.s32 %v388, 1
        %vm394 = vcmp.gt.s32.totalorder %v393, 0
        %v395 = vsel %vm394, %v393, 0
        %v396 = vshrl.u32 %v395, 5
        %v397 = vand.u32 %v395, 31
        %v398 = vsub.s32 32, %v397
        %v399 = vshrl.u32 683565275, %v398
        %v400 = vshll.u32 683565275, %v397
        %v401 = vshrl.u32 2475754826, %v398
        %v402 = vor.u32 %v400, %v401
        %v403 = vshll.u32 2475754826, %v397
        %v404 = vshrl.u32 2131351028, %v398
        %v405 = vor.u32 %v403, %v404
        %v406 = vshll.u32 2131351028, %v397
        %v407 = vshrl.u32 2102212464, %v398
        %v408 = vor.u32 %v406, %v407
        %v409 = vshll.u32 2102212464, %v397
        %v410 = vshrl.u32 920167782, %v398
        %v411 = vor.u32 %v409, %v410
        %v412 = vshll.u32 920167782, %v397
        %v413 = vshrl.u32 1326507024, %v398
        %v414 = vor.u32 %v412, %v413
        %vm415 = vcmp.lt.s32.totalorder %v396, 1
        %vm416 = vcmp.lt.s32.totalorder %v396, 2
        %vm417 = vcmp.lt.s32.totalorder %v396, 3
        %vm418 = vcmp.lt.s32.totalorder %v396, 4
        %v419 = vsel %vm415, %v399, %v402
        %v420 = vsel %vm418, %v408, 2102212464
        %v421 = vsel %vm417, %v405, %v420
        %v422 = vsel %vm416, %v419, %v421
        %v423 = vsel %vm415, %v402, %v405
        %v424 = vsel %vm418, %v411, 920167782
        %v425 = vsel %vm417, %v408, %v424
        %v426 = vsel %vm416, %v423, %v425
        %v427 = vsel %vm415, %v405, %v408
        %v428 = vsel %vm418, %v414, 1326507024
        %v429 = vsel %vm417, %v411, %v428
        %v430 = vsel %vm416, %v427, %v429
        %v431 = vshll.u32 %v391, 8
        %v432 = vmul.u32.u64.compose %v431, %v430
        %v433 = vextract.low.u32 %v432
        %v434 = vextract.high.u32 %v432
        %v435 = vmul.u32.u64.compose %v431, %v426
        %v436 = vextract.low.u32 %v435
        %v437 = vextract.high.u32 %v435
        %v438 = vmul.u32 %v431, %v422
        %v439 = vadd.s32 %v434, %v436
        %vm440 = vc.u32 %v434, %v436
        %v441 = vadd.s32 %v437, 1
        %v442 = vsel %vm440, %v441, %v437
        %v443 = vadd.s32 %v438, %v442
        %v444 = vadd.s32 %v443, 536870912
        %v445 = vshrl.u32 %v444, 30
        %v446 = vshll.u32 %v445, 30
        %v447 = vsub.s32 %v443, %v446
        %vm448 = vcmp.lt.s32.totalorder %v447, 0
        %v449 = vsub.s32 0, %v447
        %v450 = vsel %vm448, %v449, %v447
        %v451 = vclz %v450
        %v452 = vsub.s32 %v451, 2
        %vm453 = vcmp.gt.s32.totalorder 0, %v452
        %v454 = vsel %vm453, 0, %v452
        %v455 = vsub.s32 32, %v454
        %v456 = vshll.u32 %v447, %v454
        %v457 = vshrl.u32 %v439, %v455
        %v458 = vor.u32 %v456, %v457
        %v459 = vsub.s32 4294967266, %v454
        %v460 = vadd.s32 %v459, 127
        %v461 = vshll.u32 %v460, 23
        %v462 = vor.u32 4788187, %v461
        %v463 = vand.u32 2147483647, %v462
        %v465 = vcvt.s32.f32 %v458
        %v466 = vmul.f32 %v465, %v463
        %v467 = vxor.u32 %v466, 2147483648
        %v468 = vsel %vm385, %v467, %v466
        %v469 = vsub.s32 4, %v445
        %v470 = vsel %vm385, %v469, %v445
        %v471 = vsel %vm384, %v272, %v468
        %v472 = vsel %vm384, 0, %v470
        %v473 = vcosq.f32.pop %v471
        %v474 = vsinq.f32.pop %v471
        %vm475 = vweird.f32 %v272
        %v476 = vadd.s32 %v472, 3
        %v477 = vand.u32 %v476, 3
        %vm478 = vcmp.lt.s32.totalorder %v477, 2
        %vm479 = vcmp.eq.s32.totalorder %v477, 0
        %v480 = vxor.u32 %v474, 2147483648
        %v481 = vsel %vm479, %v473, %v480
        %vm482 = vcmp.eq.s32.totalorder %v477, 2
        %v483 = vxor.u32 %v473, 2147483648
        %v484 = vsel %vm482, %v483, %v474
        %v485 = vsel %vm478, %v481, %v484
        %v486 = vsel %vm475, nan, %v485
        %v487 = vand.u32 2147483647, %v273
        %vm488 = vcmp.le.f32.partialorder %v487, 0.7853982
        %vm489 = vcmp.lt.s32.totalorder %v273, 0
        %v490 = vand.u32 %v273, 2139095040
        %v491 = vshrl.u32 %v490, 23
        %v492 = vsub.s32 %v491, 127
        %v493 = vand.u32 2147483647, %v273
        %v494 = vand.u32 %v493, 8388607
        %v495 = vor.u32 %v494, 8388608
        %v496 = vsub.s32 0, %v495
        %v497 = vadd.s32 %v492, 1
        %vm498 = vcmp.gt.s32.totalorder %v497, 0
        %v499 = vsel %vm498, %v497, 0
        %v500 = vshrl.u32 %v499, 5
        %v501 = vand.u32 %v499, 31
        %v502 = vsub.s32 32, %v501
        %v503 = vshrl.u32 683565275, %v502
        %v504 = vshll.u32 683565275, %v501
        %v505 = vshrl.u32 2475754826, %v502
        %v506 = vor.u32 %v504, %v505
        %v507 = vshll.u32 2475754826, %v501
        %v508 = vshrl.u32 2131351028, %v502
        %v509 = vor.u32 %v507, %v508
        %v510 = vshll.u32 2131351028, %v501
        %v511 = vshrl.u32 2102212464, %v502
        %v512 = vor.u32 %v510, %v511
        %v513 = vshll.u32 2102212464, %v501
        %v514 = vshrl.u32 920167782, %v502
        %v515 = vor.u32 %v513, %v514
        %v516 = vshll.u32 920167782, %v501
        %v517 = vshrl.u32 1326507024, %v502
        %v518 = vor.u32 %v516, %v517
        %vm519 = vcmp.lt.s32.totalorder %v500, 1
        %vm520 = vcmp.lt.s32.totalorder %v500, 2
        %vm521 = vcmp.lt.s32.totalorder %v500, 3
        %vm522 = vcmp.lt.s32.totalorder %v500, 4
        %v523 = vsel %vm519, %v503, %v506
        %v524 = vsel %vm522, %v512, 2102212464
        %v525 = vsel %vm521, %v509, %v524
        %v526 = vsel %vm520, %v523, %v525
        %v527 = vsel %vm519, %v506, %v509
        %v528 = vsel %vm522, %v515, 920167782
        %v529 = vsel %vm521, %v512, %v528
        %v530 = vsel %vm520, %v527, %v529
        %v531 = vsel %vm519, %v509, %v512
        %v532 = vsel %vm522, %v518, 1326507024
        %v533 = vsel %vm521, %v515, %v532
        %v534 = vsel %vm520, %v531, %v533
        %v535 = vshll.u32 %v495, 8
        %v536 = vmul.u32.u64.compose %v535, %v534
        %v537 = vextract.low.u32 %v536
        %v538 = vextract.high.u32 %v536
        %v539 = vmul.u32.u64.compose %v535, %v530
        %v540 = vextract.low.u32 %v539
        %v541 = vextract.high.u32 %v539
        %v542 = vmul.u32 %v535, %v526
        %v543 = vadd.s32 %v538, %v540
        %vm544 = vc.u32 %v538, %v540
        %v545 = vadd.s32 %v541, 1
        %v546 = vsel %vm544, %v545, %v541
        %v547 = vadd.s32 %v542, %v546
        %v548 = vadd.s32 %v547, 536870912
        %v549 = vshrl.u32 %v548, 30
        %v550 = vshll.u32 %v549, 30
        %v551 = vsub.s32 %v547, %v550
        %vm552 = vcmp.lt.s32.totalorder %v551, 0
        %v553 = vsub.s32 0, %v551
        %v554 = vsel %vm552, %v553, %v551
        %v555 = vclz %v554
        %v556 = vsub.s32 %v555, 2
        %vm557 = vcmp.gt.s32.totalorder 0, %v556
        %v558 = vsel %vm557, 0, %v556
        %v559 = vsub.s32 32, %v558
        %v560 = vshll.u32 %v551, %v558
        %v561 = vshrl.u32 %v543, %v559
        %v562 = vor.u32 %v560, %v561
        %v563 = vsub.s32 4294967266, %v558
        %v564 = vadd.s32 %v563, 127
        %v565 = vshll.u32 %v564, 23
        %v566 = vor.u32 4788187, %v565
        %v567 = vand.u32 2147483647, %v566
        %v569 = vcvt.s32.f32 %v562
        %v570 = vmul.f32 %v569, %v567
        %v571 = vxor.u32 %v570, 2147483648
        %v572 = vsel %vm489, %v571, %v570
        %v573 = vsub.s32 4, %v549
        %v574 = vsel %vm489, %v573, %v549
        %v575 = vsel %vm488, %v273, %v572
        %v576 = vsel %vm488, 0, %v574
        %v577 = vcosq.f32.pop %v575
        %v578 = vsinq.f32.pop %v575
        %vm579 = vweird.f32 %v273
        %v580 = vadd.s32 %v576, 3
        %v581 = vand.u32 %v580, 3
        %vm582 = vcmp.lt.s32.totalorder %v581, 2
        %vm583 = vcmp.eq.s32.totalorder %v581, 0
        %v584 = vxor.u32 %v578, 2147483648
        %v585 = vsel %vm583, %v577, %v584
        %vm586 = vcmp.eq.s32.totalorder %v581, 2
        %v587 = vxor.u32 %v577, 2147483648
        %v588 = vsel %vm586, %v587, %v578
        %v589 = vsel %vm582, %v585, %v588
        %v590 = vsel %vm579, nan, %v589
        %v591 = vand.u32 2147483647, %v274
        %vm592 = vcmp.le.f32.partialorder %v591, 0.7853982
        %vm593 = vcmp.lt.s32.totalorder %v274, 0
        %v594 = vand.u32 %v274, 2139095040
        %v595 = vshrl.u32 %v594, 23
        %v596 = vsub.s32 %v595, 127
        %v597 = vand.u32 2147483647, %v274
        %v598 = vand.u32 %v597, 8388607
        %v599 = vor.u32 %v598, 8388608
        %v600 = vsub.s32 0, %v599
        %v601 = vadd.s32 %v596, 1
        %vm602 = vcmp.gt.s32.totalorder %v601, 0
        %v603 = vsel %vm602, %v601, 0
        %v604 = vshrl.u32 %v603, 5
        %v605 = vand.u32 %v603, 31
        %v606 = vsub.s32 32, %v605
        %v607 = vshrl.u32 683565275, %v606
        %v608 = vshll.u32 683565275, %v605
        %v609 = vshrl.u32 2475754826, %v606
        %v610 = vor.u32 %v608, %v609
        %v611 = vshll.u32 2475754826, %v605
        %v612 = vshrl.u32 2131351028, %v606
        %v613 = vor.u32 %v611, %v612
        %v614 = vshll.u32 2131351028, %v605
        %v615 = vshrl.u32 2102212464, %v606
        %v616 = vor.u32 %v614, %v615
        %v617 = vshll.u32 2102212464, %v605
        %v618 = vshrl.u32 920167782, %v606
        %v619 = vor.u32 %v617, %v618
        %v620 = vshll.u32 920167782, %v605
        %v621 = vshrl.u32 1326507024, %v606
        %v622 = vor.u32 %v620, %v621
        %vm623 = vcmp.lt.s32.totalorder %v604, 1
        %vm624 = vcmp.lt.s32.totalorder %v604, 2
        %vm625 = vcmp.lt.s32.totalorder %v604, 3
        %vm626 = vcmp.lt.s32.totalorder %v604, 4
        %v627 = vsel %vm623, %v607, %v610
        %v628 = vsel %vm626, %v616, 2102212464
        %v629 = vsel %vm625, %v613, %v628
        %v630 = vsel %vm624, %v627, %v629
        %v631 = vsel %vm623, %v610, %v613
        %v632 = vsel %vm626, %v619, 920167782
        %v633 = vsel %vm625, %v616, %v632
        %v634 = vsel %vm624, %v631, %v633
        %v635 = vsel %vm623, %v613, %v616
        %v636 = vsel %vm626, %v622, 1326507024
        %v637 = vsel %vm625, %v619, %v636
        %v638 = vsel %vm624, %v635, %v637
        %v639 = vshll.u32 %v599, 8
        %v640 = vmul.u32.u64.compose %v639, %v638
        %v641 = vextract.low.u32 %v640
        %v642 = vextract.high.u32 %v640
        %v643 = vmul.u32.u64.compose %v639, %v634
        %v644 = vextract.low.u32 %v643
        %v645 = vextract.high.u32 %v643
        %v646 = vmul.u32 %v639, %v630
        %v647 = vadd.s32 %v642, %v644
        %vm648 = vc.u32 %v642, %v644
        %v649 = vadd.s32 %v645, 1
        %v650 = vsel %vm648, %v649, %v645
        %v651 = vadd.s32 %v646, %v650
        %v652 = vadd.s32 %v651, 536870912
        %v653 = vshrl.u32 %v652, 30
        %v654 = vshll.u32 %v653, 30
        %v655 = vsub.s32 %v651, %v654
        %vm656 = vcmp.lt.s32.totalorder %v655, 0
        %v657 = vsub.s32 0, %v655
        %v658 = vsel %vm656, %v657, %v655
        %v659 = vclz %v658
        %v660 = vsub.s32 %v659, 2
        %vm661 = vcmp.gt.s32.totalorder 0, %v660
        %v662 = vsel %vm661, 0, %v660
        %v663 = vsub.s32 32, %v662
        %v664 = vshll.u32 %v655, %v662
        %v665 = vshrl.u32 %v647, %v663
        %v666 = vor.u32 %v664, %v665
        %v667 = vsub.s32 4294967266, %v662
        %v668 = vadd.s32 %v667, 127
        %v669 = vshll.u32 %v668, 23
        %v670 = vor.u32 4788187, %v669
        %v671 = vand.u32 2147483647, %v670
        %v673 = vcvt.s32.f32 %v666
        %v674 = vmul.f32 %v673, %v671
        %v675 = vxor.u32 %v674, 2147483648
        %v676 = vsel %vm593, %v675, %v674
        %v677 = vsub.s32 4, %v653
        %v678 = vsel %vm593, %v677, %v653
        %v679 = vsel %vm592, %v274, %v676
        %v680 = vsel %vm592, 0, %v678
        %v681 = vcosq.f32.pop %v679
        %v682 = vsinq.f32.pop %v679
        %vm683 = vweird.f32 %v274
        %v684 = vadd.s32 %v680, 3
        %v685 = vand.u32 %v684, 3
        %vm686 = vcmp.lt.s32.totalorder %v685, 2
        %vm687 = vcmp.eq.s32.totalorder %v685, 0
        %v688 = vxor.u32 %v682, 2147483648
        %v689 = vsel %vm687, %v681, %v688
        %vm690 = vcmp.eq.s32.totalorder %v685, 2
        %v691 = vxor.u32 %v681, 2147483648
        %v692 = vsel %vm690, %v691, %v682
        %v693 = vsel %vm686, %v689, %v692
        %v694 = vsel %vm683, nan, %v693
        %v695 = vand.u32 2147483647, %v275
        %vm696 = vcmp.le.f32.partialorder %v695, 0.7853982
        %vm697 = vcmp.lt.s32.totalorder %v275, 0
        %v698 = vand.u32 %v275, 2139095040
        %v699 = vshrl.u32 %v698, 23
        %v700 = vsub.s32 %v699, 127
        %v701 = vand.u32 2147483647, %v275
        %v702 = vand.u32 %v701, 8388607
        %v703 = vor.u32 %v702, 8388608
        %v704 = vsub.s32 0, %v703
        %v705 = vadd.s32 %v700, 1
        %vm706 = vcmp.gt.s32.totalorder %v705, 0
        %v707 = vsel %vm706, %v705, 0
        %v708 = vshrl.u32 %v707, 5
        %v709 = vand.u32 %v707, 31
        %v710 = vsub.s32 32, %v709
        %v711 = vshrl.u32 683565275, %v710
        %v712 = vshll.u32 683565275, %v709
        %v713 = vshrl.u32 2475754826, %v710
        %v714 = vor.u32 %v712, %v713
        %v715 = vshll.u32 2475754826, %v709
        %v716 = vshrl.u32 2131351028, %v710
        %v717 = vor.u32 %v715, %v716
        %v718 = vshll.u32 2131351028, %v709
        %v719 = vshrl.u32 2102212464, %v710
        %v720 = vor.u32 %v718, %v719
        %v721 = vshll.u32 2102212464, %v709
        %v722 = vshrl.u32 920167782, %v710
        %v723 = vor.u32 %v721, %v722
        %v724 = vshll.u32 920167782, %v709
        %v725 = vshrl.u32 1326507024, %v710
        %v726 = vor.u32 %v724, %v725
        %vm727 = vcmp.lt.s32.totalorder %v708, 1
        %vm728 = vcmp.lt.s32.totalorder %v708, 2
        %vm729 = vcmp.lt.s32.totalorder %v708, 3
        %vm730 = vcmp.lt.s32.totalorder %v708, 4
        %v731 = vsel %vm727, %v711, %v714
        %v732 = vsel %vm730, %v720, 2102212464
        %v733 = vsel %vm729, %v717, %v732
        %v734 = vsel %vm728, %v731, %v733
        %v735 = vsel %vm727, %v714, %v717
        %v736 = vsel %vm730, %v723, 920167782
        %v737 = vsel %vm729, %v720, %v736
        %v738 = vsel %vm728, %v735, %v737
        %v739 = vsel %vm727, %v717, %v720
        %v740 = vsel %vm730, %v726, 1326507024
        %v741 = vsel %vm729, %v723, %v740
        %v742 = vsel %vm728, %v739, %v741
        %v743 = vshll.u32 %v703, 8
        %v744 = vmul.u32.u64.compose %v743, %v742
        %v745 = vextract.low.u32 %v744
        %v746 = vextract.high.u32 %v744
        %v747 = vmul.u32.u64.compose %v743, %v738
        %v748 = vextract.low.u32 %v747
        %v749 = vextract.high.u32 %v747
        %v750 = vmul.u32 %v743, %v734
        %v751 = vadd.s32 %v746, %v748
        %vm752 = vc.u32 %v746, %v748
        %v753 = vadd.s32 %v749, 1
        %v754 = vsel %vm752, %v753, %v749
        %v755 = vadd.s32 %v750, %v754
        %v756 = vadd.s32 %v755, 536870912
        %v757 = vshrl.u32 %v756, 30
        %v758 = vshll.u32 %v757, 30
        %v759 = vsub.s32 %v755, %v758
        %vm760 = vcmp.lt.s32.totalorder %v759, 0
        %v761 = vsub.s32 0, %v759
        %v762 = vsel %vm760, %v761, %v759
        %v763 = vclz %v762
        %v764 = vsub.s32 %v763, 2
        %vm765 = vcmp.gt.s32.totalorder 0, %v764
        %v766 = vsel %vm765, 0, %v764
        %v767 = vsub.s32 32, %v766
        %v768 = vshll.u32 %v759, %v766
        %v769 = vshrl.u32 %v751, %v767
        %v770 = vor.u32 %v768, %v769
        %v771 = vsub.s32 4294967266, %v766
        %v772 = vadd.s32 %v771, 127
        %v773 = vshll.u32 %v772, 23
        %v774 = vor.u32 4788187, %v773
        %v775 = vand.u32 2147483647, %v774
        %v777 = vcvt.s32.f32 %v770
        %v778 = vmul.f32 %v777, %v775
        %v779 = vxor.u32 %v778, 2147483648
        %v780 = vsel %vm697, %v779, %v778
        %v781 = vsub.s32 4, %v757
        %v782 = vsel %vm697, %v781, %v757
        %v783 = vsel %vm696, %v275, %v780
        %v784 = vsel %vm696, 0, %v782
        %v785 = vcosq.f32.pop %v783
        %v786 = vsinq.f32.pop %v783
        %vm787 = vweird.f32 %v275
        %v788 = vadd.s32 %v784, 3
        %v789 = vand.u32 %v788, 3
        %vm790 = vcmp.lt.s32.totalorder %v789, 2
        %vm791 = vcmp.eq.s32.totalorder %v789, 0
        %v792 = vxor.u32 %v786, 2147483648
        %v793 = vsel %vm791, %v785, %v792
        %vm794 = vcmp.eq.s32.totalorder %v789, 2
        %v795 = vxor.u32 %v785, 2147483648
        %v796 = vsel %vm794, %v795, %v786
        %v797 = vsel %vm790, %v793, %v796
        %v798 = vsel %vm787, nan, %v797
        %v799 = vand.u32 2147483647, %v276
        %vm800 = vcmp.le.f32.partialorder %v799, 0.7853982
        %vm801 = vcmp.lt.s32.totalorder %v276, 0
        %v802 = vand.u32 %v276, 2139095040
        %v803 = vshrl.u32 %v802, 23
        %v804 = vsub.s32 %v803, 127
        %v805 = vand.u32 2147483647, %v276
        %v806 = vand.u32 %v805, 8388607
        %v807 = vor.u32 %v806, 8388608
        %v808 = vsub.s32 0, %v807
        %v809 = vadd.s32 %v804, 1
        %vm810 = vcmp.gt.s32.totalorder %v809, 0
        %v811 = vsel %vm810, %v809, 0
        %v812 = vshrl.u32 %v811, 5
        %v813 = vand.u32 %v811, 31
        %v814 = vsub.s32 32, %v813
        %v815 = vshrl.u32 683565275, %v814
        %v816 = vshll.u32 683565275, %v813
        %v817 = vshrl.u32 2475754826, %v814
        %v818 = vor.u32 %v816, %v817
        %v819 = vshll.u32 2475754826, %v813
        %v820 = vshrl.u32 2131351028, %v814
        %v821 = vor.u32 %v819, %v820
        %v822 = vshll.u32 2131351028, %v813
        %v823 = vshrl.u32 2102212464, %v814
        %v824 = vor.u32 %v822, %v823
        %v825 = vshll.u32 2102212464, %v813
        %v826 = vshrl.u32 920167782, %v814
        %v827 = vor.u32 %v825, %v826
        %v828 = vshll.u32 920167782, %v813
        %v829 = vshrl.u32 1326507024, %v814
        %v830 = vor.u32 %v828, %v829
        %vm831 = vcmp.lt.s32.totalorder %v812, 1
        %vm832 = vcmp.lt.s32.totalorder %v812, 2
        %vm833 = vcmp.lt.s32.totalorder %v812, 3
        %vm834 = vcmp.lt.s32.totalorder %v812, 4
        %v835 = vsel %vm831, %v815, %v818
        %v836 = vsel %vm834, %v824, 2102212464
        %v837 = vsel %vm833, %v821, %v836
        %v838 = vsel %vm832, %v835, %v837
        %v839 = vsel %vm831, %v818, %v821
        %v840 = vsel %vm834, %v827, 920167782
        %v841 = vsel %vm833, %v824, %v840
        %v842 = vsel %vm832, %v839, %v841
        %v843 = vsel %vm831, %v821, %v824
        %v844 = vsel %vm834, %v830, 1326507024
        %v845 = vsel %vm833, %v827, %v844
        %v846 = vsel %vm832, %v843, %v845
        %v847 = vshll.u32 %v807, 8
        %v848 = vmul.u32.u64.compose %v847, %v846
        %v849 = vextract.low.u32 %v848
        %v850 = vextract.high.u32 %v848
        %v851 = vmul.u32.u64.compose %v847, %v842
        %v852 = vextract.low.u32 %v851
        %v853 = vextract.high.u32 %v851
        %v854 = vmul.u32 %v847, %v838
        %v855 = vadd.s32 %v850, %v852
        %vm856 = vc.u32 %v850, %v852
        %v857 = vadd.s32 %v853, 1
        %v858 = vsel %vm856, %v857, %v853
        %v859 = vadd.s32 %v854, %v858
        %v860 = vadd.s32 %v859, 536870912
        %v861 = vshrl.u32 %v860, 30
        %v862 = vshll.u32 %v861, 30
        %v863 = vsub.s32 %v859, %v862
        %vm864 = vcmp.lt.s32.totalorder %v863, 0
        %v865 = vsub.s32 0, %v863
        %v866 = vsel %vm864, %v865, %v863
        %v867 = vclz %v866
        %v868 = vsub.s32 %v867, 2
        %vm869 = vcmp.gt.s32.totalorder 0, %v868
        %v870 = vsel %vm869, 0, %v868
        %v871 = vsub.s32 32, %v870
        %v872 = vshll.u32 %v863, %v870
        %v873 = vshrl.u32 %v855, %v871
        %v874 = vor.u32 %v872, %v873
        %v875 = vsub.s32 4294967266, %v870
        %v876 = vadd.s32 %v875, 127
        %v877 = vshll.u32 %v876, 23
        %v878 = vor.u32 4788187, %v877
        %v879 = vand.u32 2147483647, %v878
        %v881 = vcvt.s32.f32 %v874
        %v882 = vmul.f32 %v881, %v879
        %v883 = vxor.u32 %v882, 2147483648
        %v884 = vsel %vm801, %v883, %v882
        %v885 = vsub.s32 4, %v861
        %v886 = vsel %vm801, %v885, %v861
        %v887 = vsel %vm800, %v276, %v884
        %v888 = vsel %vm800, 0, %v886
        %v889 = vcosq.f32.pop %v887
        %v890 = vsinq.f32.pop %v887
        %vm891 = vweird.f32 %v276
        %v892 = vadd.s32 %v888, 3
        %v893 = vand.u32 %v892, 3
        %vm894 = vcmp.lt.s32.totalorder %v893, 2
        %vm895 = vcmp.eq.s32.totalorder %v893, 0
        %v896 = vxor.u32 %v890, 2147483648
        %v897 = vsel %vm895, %v889, %v896
        %vm898 = vcmp.eq.s32.totalorder %v893, 2
        %v899 = vxor.u32 %v889, 2147483648
        %v900 = vsel %vm898, %v899, %v890
        %v901 = vsel %vm894, %v897, %v900
        %v902 = vsel %vm891, nan, %v901
        %v903 = vand.u32 2147483647, %v277
        %vm904 = vcmp.le.f32.partialorder %v903, 0.7853982
        %vm905 = vcmp.lt.s32.totalorder %v277, 0
        %v906 = vand.u32 %v277, 2139095040
        %v907 = vshrl.u32 %v906, 23
        %v908 = vsub.s32 %v907, 127
        %v909 = vand.u32 2147483647, %v277
        %v910 = vand.u32 %v909, 8388607
        %v911 = vor.u32 %v910, 8388608
        %v912 = vsub.s32 0, %v911
        %v913 = vadd.s32 %v908, 1
        %vm914 = vcmp.gt.s32.totalorder %v913, 0
        %v915 = vsel %vm914, %v913, 0
        %v916 = vshrl.u32 %v915, 5
        %v917 = vand.u32 %v915, 31
        %v918 = vsub.s32 32, %v917
        %v919 = vshrl.u32 683565275, %v918
        %v920 = vshll.u32 683565275, %v917
        %v921 = vshrl.u32 2475754826, %v918
        %v922 = vor.u32 %v920, %v921
        %v923 = vshll.u32 2475754826, %v917
        %v924 = vshrl.u32 2131351028, %v918
        %v925 = vor.u32 %v923, %v924
        %v926 = vshll.u32 2131351028, %v917
        %v927 = vshrl.u32 2102212464, %v918
        %v928 = vor.u32 %v926, %v927
        %v929 = vshll.u32 2102212464, %v917
        %v930 = vshrl.u32 920167782, %v918
        %v931 = vor.u32 %v929, %v930
        %v932 = vshll.u32 920167782, %v917
        %v933 = vshrl.u32 1326507024, %v918
        %v934 = vor.u32 %v932, %v933
        %vm935 = vcmp.lt.s32.totalorder %v916, 1
        %vm936 = vcmp.lt.s32.totalorder %v916, 2
        %vm937 = vcmp.lt.s32.totalorder %v916, 3
        %vm938 = vcmp.lt.s32.totalorder %v916, 4
        %v939 = vsel %vm935, %v919, %v922
        %v940 = vsel %vm938, %v928, 2102212464
        %v941 = vsel %vm937, %v925, %v940
        %v942 = vsel %vm936, %v939, %v941
        %v943 = vsel %vm935, %v922, %v925
        %v944 = vsel %vm938, %v931, 920167782
        %v945 = vsel %vm937, %v928, %v944
        %v946 = vsel %vm936, %v943, %v945
        %v947 = vsel %vm935, %v925, %v928
        %v948 = vsel %vm938, %v934, 1326507024
        %v949 = vsel %vm937, %v931, %v948
        %v950 = vsel %vm936, %v947, %v949
        %v951 = vshll.u32 %v911, 8
        %v952 = vmul.u32.u64.compose %v951, %v950
        %v953 = vextract.low.u32 %v952
        %v954 = vextract.high.u32 %v952
        %v955 = vmul.u32.u64.compose %v951, %v946
        %v956 = vextract.low.u32 %v955
        %v957 = vextract.high.u32 %v955
        %v958 = vmul.u32 %v951, %v942
        %v959 = vadd.s32 %v954, %v956
        %vm960 = vc.u32 %v954, %v956
        %v961 = vadd.s32 %v957, 1
        %v962 = vsel %vm960, %v961, %v957
        %v963 = vadd.s32 %v958, %v962
        %v964 = vadd.s32 %v963, 536870912
        %v965 = vshrl.u32 %v964, 30
        %v966 = vshll.u32 %v965, 30
        %v967 = vsub.s32 %v963, %v966
        %vm968 = vcmp.lt.s32.totalorder %v967, 0
        %v969 = vsub.s32 0, %v967
        %v970 = vsel %vm968, %v969, %v967
        %v971 = vclz %v970
        %v972 = vsub.s32 %v971, 2
        %vm973 = vcmp.gt.s32.totalorder 0, %v972
        %v974 = vsel %vm973, 0, %v972
        %v975 = vsub.s32 32, %v974
        %v976 = vshll.u32 %v967, %v974
        %v977 = vshrl.u32 %v959, %v975
        %v978 = vor.u32 %v976, %v977
        %v979 = vsub.s32 4294967266, %v974
        %v980 = vadd.s32 %v979, 127
        %v981 = vshll.u32 %v980, 23
        %v982 = vor.u32 4788187, %v981
        %v983 = vand.u32 2147483647, %v982
        %v985 = vcvt.s32.f32 %v978
        %v986 = vmul.f32 %v985, %v983
        %v987 = vxor.u32 %v986, 2147483648
        %v988 = vsel %vm905, %v987, %v986
        %v989 = vsub.s32 4, %v965
        %v990 = vsel %vm905, %v989, %v965
        %v991 = vsel %vm904, %v277, %v988
        %v992 = vsel %vm904, 0, %v990
        %v993 = vcosq.f32.pop %v991
        %v994 = vsinq.f32.pop %v991
        %vm995 = vweird.f32 %v277
        %v996 = vadd.s32 %v992, 3
        %v997 = vand.u32 %v996, 3
        %vm998 = vcmp.lt.s32.totalorder %v997, 2
        %vm999 = vcmp.eq.s32.totalorder %v997, 0
        %v1000 = vxor.u32 %v994, 2147483648
        %v1001 = vsel %vm999, %v993, %v1000
        %vm1002 = vcmp.eq.s32.totalorder %v997, 2
        %v1003 = vxor.u32 %v993, 2147483648
        %v1004 = vsel %vm1002, %v1003, %v994
        %v1005 = vsel %vm998, %v1001, %v1004
        %v1006 = vsel %vm995, nan, %v1005
        %v1007 = vand.u32 2147483647, %v278
        %vm1008 = vcmp.le.f32.partialorder %v1007, 0.7853982
        %vm1009 = vcmp.lt.s32.totalorder %v278, 0
        %v1010 = vand.u32 %v278, 2139095040
        %v1011 = vshrl.u32 %v1010, 23
        %v1012 = vsub.s32 %v1011, 127
        %v1013 = vand.u32 2147483647, %v278
        %v1014 = vand.u32 %v1013, 8388607
        %v1015 = vor.u32 %v1014, 8388608
        %v1016 = vsub.s32 0, %v1015
        %v1017 = vadd.s32 %v1012, 1
        %vm1018 = vcmp.gt.s32.totalorder %v1017, 0
        %v1019 = vsel %vm1018, %v1017, 0
        %v1020 = vshrl.u32 %v1019, 5
        %v1021 = vand.u32 %v1019, 31
        %v1022 = vsub.s32 32, %v1021
        %v1023 = vshrl.u32 683565275, %v1022
        %v1024 = vshll.u32 683565275, %v1021
        %v1025 = vshrl.u32 2475754826, %v1022
        %v1026 = vor.u32 %v1024, %v1025
        %v1027 = vshll.u32 2475754826, %v1021
        %v1028 = vshrl.u32 2131351028, %v1022
        %v1029 = vor.u32 %v1027, %v1028
        %v1030 = vshll.u32 2131351028, %v1021
        %v1031 = vshrl.u32 2102212464, %v1022
        %v1032 = vor.u32 %v1030, %v1031
        %v1033 = vshll.u32 2102212464, %v1021
        %v1034 = vshrl.u32 920167782, %v1022
        %v1035 = vor.u32 %v1033, %v1034
        %v1036 = vshll.u32 920167782, %v1021
        %v1037 = vshrl.u32 1326507024, %v1022
        %v1038 = vor.u32 %v1036, %v1037
        %vm1039 = vcmp.lt.s32.totalorder %v1020, 1
        %vm1040 = vcmp.lt.s32.totalorder %v1020, 2
        %vm1041 = vcmp.lt.s32.totalorder %v1020, 3
        %vm1042 = vcmp.lt.s32.totalorder %v1020, 4
        %v1043 = vsel %vm1039, %v1023, %v1026
        %v1044 = vsel %vm1042, %v1032, 2102212464
        %v1045 = vsel %vm1041, %v1029, %v1044
        %v1046 = vsel %vm1040, %v1043, %v1045
        %v1047 = vsel %vm1039, %v1026, %v1029
        %v1048 = vsel %vm1042, %v1035, 920167782
        %v1049 = vsel %vm1041, %v1032, %v1048
        %v1050 = vsel %vm1040, %v1047, %v1049
        %v1051 = vsel %vm1039, %v1029, %v1032
        %v1052 = vsel %vm1042, %v1038, 1326507024
        %v1053 = vsel %vm1041, %v1035, %v1052
        %v1054 = vsel %vm1040, %v1051, %v1053
        %v1055 = vshll.u32 %v1015, 8
        %v1056 = vmul.u32.u64.compose %v1055, %v1054
        %v1057 = vextract.low.u32 %v1056
        %v1058 = vextract.high.u32 %v1056
        %v1059 = vmul.u32.u64.compose %v1055, %v1050
        %v1060 = vextract.low.u32 %v1059
        %v1061 = vextract.high.u32 %v1059
        %v1062 = vmul.u32 %v1055, %v1046
        %v1063 = vadd.s32 %v1058, %v1060
        %vm1064 = vc.u32 %v1058, %v1060
        %v1065 = vadd.s32 %v1061, 1
        %v1066 = vsel %vm1064, %v1065, %v1061
        %v1067 = vadd.s32 %v1062, %v1066
        %v1068 = vadd.s32 %v1067, 536870912
        %v1069 = vshrl.u32 %v1068, 30
        %v1070 = vshll.u32 %v1069, 30
        %v1071 = vsub.s32 %v1067, %v1070
        %vm1072 = vcmp.lt.s32.totalorder %v1071, 0
        %v1073 = vsub.s32 0, %v1071
        %v1074 = vsel %vm1072, %v1073, %v1071
        %v1075 = vclz %v1074
        %v1076 = vsub.s32 %v1075, 2
        %vm1077 = vcmp.gt.s32.totalorder 0, %v1076
        %v1078 = vsel %vm1077, 0, %v1076
        %v1079 = vsub.s32 32, %v1078
        %v1080 = vshll.u32 %v1071, %v1078
        %v1081 = vshrl.u32 %v1063, %v1079
        %v1082 = vor.u32 %v1080, %v1081
        %v1083 = vsub.s32 4294967266, %v1078
        %v1084 = vadd.s32 %v1083, 127
        %v1085 = vshll.u32 %v1084, 23
        %v1086 = vor.u32 4788187, %v1085
        %v1087 = vand.u32 2147483647, %v1086
        %v1089 = vcvt.s32.f32 %v1082
        %v1090 = vmul.f32 %v1089, %v1087
        %v1091 = vxor.u32 %v1090, 2147483648
        %v1092 = vsel %vm1009, %v1091, %v1090
        %v1093 = vsub.s32 4, %v1069
        %v1094 = vsel %vm1009, %v1093, %v1069
        %v1095 = vsel %vm1008, %v278, %v1092
        %v1096 = vsel %vm1008, 0, %v1094
        %v1097 = vcosq.f32.pop %v1095
        %v1098 = vsinq.f32.pop %v1095
        %vm1099 = vweird.f32 %v278
        %v1100 = vadd.s32 %v1096, 3
        %v1101 = vand.u32 %v1100, 3
        %vm1102 = vcmp.lt.s32.totalorder %v1101, 2
        %vm1103 = vcmp.eq.s32.totalorder %v1101, 0
        %v1104 = vxor.u32 %v1098, 2147483648
        %v1105 = vsel %vm1103, %v1097, %v1104
        %vm1106 = vcmp.eq.s32.totalorder %v1101, 2
        %v1107 = vxor.u32 %v1097, 2147483648
        %v1108 = vsel %vm1106, %v1107, %v1098
        %v1109 = vsel %vm1102, %v1105, %v1108
        %v1110 = vsel %vm1099, nan, %v1109
        %1111 = vst [vmem:[%s167] sm:$0xff] %v382
        %1112 = vst [vmem:[%s167 + $0x8] sm:$0xff] %v486
        %1113 = vst [vmem:[%s167 + $0x10] sm:$0xff] %v590
        %1114 = vst [vmem:[%s167 + $0x18] sm:$0xff] %v694
        %1115 = vst [vmem:[%s167 + $0x20] sm:$0xff] %v798
        %1116 = vst [vmem:[%s167 + $0x28] sm:$0xff] %v902
        %1117 = vst [vmem:[%s167 + $0x30] sm:$0xff] %v1006
        %1118 = vst [vmem:[%s167 + $0x38] sm:$0xff] %v1110
        %v1119 = vand.u32 2147483647, %v271
        %vm1120 = vcmp.le.f32.partialorder %v1119, 0.7853982
        %vm1121 = vcmp.lt.s32.totalorder %v271, 0
        %v1122 = vand.u32 %v271, 2139095040
        %v1123 = vshrl.u32 %v1122, 23
        %v1124 = vsub.s32 %v1123, 127
        %v1125 = vand.u32 2147483647, %v271
        %v1126 = vand.u32 %v1125, 8388607
        %v1127 = vor.u32 %v1126, 8388608
        %v1128 = vsub.s32 0, %v1127
        %v1129 = vadd.s32 %v1124, 1
        %vm1130 = vcmp.gt.s32.totalorder %v1129, 0
        %v1131 = vsel %vm1130, %v1129, 0
        %v1132 = vshrl.u32 %v1131, 5
        %v1133 = vand.u32 %v1131, 31
        %v1134 = vsub.s32 32, %v1133
        %v1135 = vshrl.u32 683565275, %v1134
        %v1136 = vshll.u32 683565275, %v1133
        %v1137 = vshrl.u32 2475754826, %v1134
        %v1138 = vor.u32 %v1136, %v1137
        %v1139 = vshll.u32 2475754826, %v1133
        %v1140 = vshrl.u32 2131351028, %v1134
        %v1141 = vor.u32 %v1139, %v1140
        %v1142 = vshll.u32 2131351028, %v1133
        %v1143 = vshrl.u32 2102212464, %v1134
        %v1144 = vor.u32 %v1142, %v1143
        %v1145 = vshll.u32 2102212464, %v1133
        %v1146 = vshrl.u32 920167782, %v1134
        %v1147 = vor.u32 %v1145, %v1146
        %v1148 = vshll.u32 920167782, %v1133
        %v1149 = vshrl.u32 1326507024, %v1134
        %v1150 = vor.u32 %v1148, %v1149
        %vm1151 = vcmp.lt.s32.totalorder %v1132, 1
        %vm1152 = vcmp.lt.s32.totalorder %v1132, 2
        %vm1153 = vcmp.lt.s32.totalorder %v1132, 3
        %vm1154 = vcmp.lt.s32.totalorder %v1132, 4
        %v1155 = vsel %vm1151, %v1135, %v1138
        %v1156 = vsel %vm1154, %v1144, 2102212464
        %v1157 = vsel %vm1153, %v1141, %v1156
        %v1158 = vsel %vm1152, %v1155, %v1157
        %v1159 = vsel %vm1151, %v1138, %v1141
        %v1160 = vsel %vm1154, %v1147, 920167782
        %v1161 = vsel %vm1153, %v1144, %v1160
        %v1162 = vsel %vm1152, %v1159, %v1161
        %v1163 = vsel %vm1151, %v1141, %v1144
        %v1164 = vsel %vm1154, %v1150, 1326507024
        %v1165 = vsel %vm1153, %v1147, %v1164
        %v1166 = vsel %vm1152, %v1163, %v1165
        %v1167 = vshll.u32 %v1127, 8
        %v1168 = vmul.u32.u64.compose %v1167, %v1166
        %v1169 = vextract.low.u32 %v1168
        %v1170 = vextract.high.u32 %v1168
        %v1171 = vmul.u32.u64.compose %v1167, %v1162
        %v1172 = vextract.low.u32 %v1171
        %v1173 = vextract.high.u32 %v1171
        %v1174 = vmul.u32 %v1167, %v1158
        %v1175 = vadd.s32 %v1170, %v1172
        %vm1176 = vc.u32 %v1170, %v1172
        %v1177 = vadd.s32 %v1173, 1
        %v1178 = vsel %vm1176, %v1177, %v1173
        %v1179 = vadd.s32 %v1174, %v1178
        %v1180 = vadd.s32 %v1179, 536870912
        %v1181 = vshrl.u32 %v1180, 30
        %v1182 = vshll.u32 %v1181, 30
        %v1183 = vsub.s32 %v1179, %v1182
        %vm1184 = vcmp.lt.s32.totalorder %v1183, 0
        %v1185 = vsub.s32 0, %v1183
        %v1186 = vsel %vm1184, %v1185, %v1183
        %v1187 = vclz %v1186
        %v1188 = vsub.s32 %v1187, 2
        %vm1189 = vcmp.gt.s32.totalorder 0, %v1188
        %v1190 = vsel %vm1189, 0, %v1188
        %v1191 = vsub.s32 32, %v1190
        %v1192 = vshll.u32 %v1183, %v1190
        %v1193 = vshrl.u32 %v1175, %v1191
        %v1194 = vor.u32 %v1192, %v1193
        %v1195 = vsub.s32 4294967266, %v1190
        %v1196 = vadd.s32 %v1195, 127
        %v1197 = vshll.u32 %v1196, 23
        %v1198 = vor.u32 4788187, %v1197
        %v1199 = vand.u32 2147483647, %v1198
        %v1201 = vcvt.s32.f32 %v1194
        %v1202 = vmul.f32 %v1201, %v1199
        %v1203 = vxor.u32 %v1202, 2147483648
        %v1204 = vsel %vm1121, %v1203, %v1202
        %v1205 = vsub.s32 4, %v1181
        %v1206 = vsel %vm1121, %v1205, %v1181
        %v1207 = vsel %vm1120, %v271, %v1204
        %v1208 = vsel %vm1120, 0, %v1206
        %v1209 = vcosq.f32.pop %v1207
        %v1210 = vsinq.f32.pop %v1207
        %vm1211 = vweird.f32 %v271
        %v1212 = vand.u32 %v1208, 3
        %vm1213 = vcmp.lt.s32.totalorder %v1212, 2
        %vm1214 = vcmp.eq.s32.totalorder %v1212, 0
        %v1215 = vxor.u32 %v1210, 2147483648
        %v1216 = vsel %vm1214, %v1209, %v1215
        %vm1217 = vcmp.eq.s32.totalorder %v1212, 2
        %v1218 = vxor.u32 %v1209, 2147483648
        %v1219 = vsel %vm1217, %v1218, %v1210
        %v1220 = vsel %vm1213, %v1216, %v1219
        %v1221 = vsel %vm1211, nan, %v1220
        %v1222 = vand.u32 2147483647, %v272
        %vm1223 = vcmp.le.f32.partialorder %v1222, 0.7853982
        %vm1224 = vcmp.lt.s32.totalorder %v272, 0
        %v1225 = vand.u32 %v272, 2139095040
        %v1226 = vshrl.u32 %v1225, 23
        %v1227 = vsub.s32 %v1226, 127
        %v1228 = vand.u32 2147483647, %v272
        %v1229 = vand.u32 %v1228, 8388607
        %v1230 = vor.u32 %v1229, 8388608
        %v1231 = vsub.s32 0, %v1230
        %v1232 = vadd.s32 %v1227, 1
        %vm1233 = vcmp.gt.s32.totalorder %v1232, 0
        %v1234 = vsel %vm1233, %v1232, 0
        %v1235 = vshrl.u32 %v1234, 5
        %v1236 = vand.u32 %v1234, 31
        %v1237 = vsub.s32 32, %v1236
        %v1238 = vshrl.u32 683565275, %v1237
        %v1239 = vshll.u32 683565275, %v1236
        %v1240 = vshrl.u32 2475754826, %v1237
        %v1241 = vor.u32 %v1239, %v1240
        %v1242 = vshll.u32 2475754826, %v1236
        %v1243 = vshrl.u32 2131351028, %v1237
        %v1244 = vor.u32 %v1242, %v1243
        %v1245 = vshll.u32 2131351028, %v1236
        %v1246 = vshrl.u32 2102212464, %v1237
        %v1247 = vor.u32 %v1245, %v1246
        %v1248 = vshll.u32 2102212464, %v1236
        %v1249 = vshrl.u32 920167782, %v1237
        %v1250 = vor.u32 %v1248, %v1249
        %v1251 = vshll.u32 920167782, %v1236
        %v1252 = vshrl.u32 1326507024, %v1237
        %v1253 = vor.u32 %v1251, %v1252
        %vm1254 = vcmp.lt.s32.totalorder %v1235, 1
        %vm1255 = vcmp.lt.s32.totalorder %v1235, 2
        %vm1256 = vcmp.lt.s32.totalorder %v1235, 3
        %vm1257 = vcmp.lt.s32.totalorder %v1235, 4
        %v1258 = vsel %vm1254, %v1238, %v1241
        %v1259 = vsel %vm1257, %v1247, 2102212464
        %v1260 = vsel %vm1256, %v1244, %v1259
        %v1261 = vsel %vm1255, %v1258, %v1260
        %v1262 = vsel %vm1254, %v1241, %v1244
        %v1263 = vsel %vm1257, %v1250, 920167782
        %v1264 = vsel %vm1256, %v1247, %v1263
        %v1265 = vsel %vm1255, %v1262, %v1264
        %v1266 = vsel %vm1254, %v1244, %v1247
        %v1267 = vsel %vm1257, %v1253, 1326507024
        %v1268 = vsel %vm1256, %v1250, %v1267
        %v1269 = vsel %vm1255, %v1266, %v1268
        %v1270 = vshll.u32 %v1230, 8
        %v1271 = vmul.u32.u64.compose %v1270, %v1269
        %v1272 = vextract.low.u32 %v1271
        %v1273 = vextract.high.u32 %v1271
        %v1274 = vmul.u32.u64.compose %v1270, %v1265
        %v1275 = vextract.low.u32 %v1274
        %v1276 = vextract.high.u32 %v1274
        %v1277 = vmul.u32 %v1270, %v1261
        %v1278 = vadd.s32 %v1273, %v1275
        %vm1279 = vc.u32 %v1273, %v1275
        %v1280 = vadd.s32 %v1276, 1
        %v1281 = vsel %vm1279, %v1280, %v1276
        %v1282 = vadd.s32 %v1277, %v1281
        %v1283 = vadd.s32 %v1282, 536870912
        %v1284 = vshrl.u32 %v1283, 30
        %v1285 = vshll.u32 %v1284, 30
        %v1286 = vsub.s32 %v1282, %v1285
        %vm1287 = vcmp.lt.s32.totalorder %v1286, 0
        %v1288 = vsub.s32 0, %v1286
        %v1289 = vsel %vm1287, %v1288, %v1286
        %v1290 = vclz %v1289
        %v1291 = vsub.s32 %v1290, 2
        %vm1292 = vcmp.gt.s32.totalorder 0, %v1291
        %v1293 = vsel %vm1292, 0, %v1291
        %v1294 = vsub.s32 32, %v1293
        %v1295 = vshll.u32 %v1286, %v1293
        %v1296 = vshrl.u32 %v1278, %v1294
        %v1297 = vor.u32 %v1295, %v1296
        %v1298 = vsub.s32 4294967266, %v1293
        %v1299 = vadd.s32 %v1298, 127
        %v1300 = vshll.u32 %v1299, 23
        %v1301 = vor.u32 4788187, %v1300
        %v1302 = vand.u32 2147483647, %v1301
        %v1304 = vcvt.s32.f32 %v1297
        %v1305 = vmul.f32 %v1304, %v1302
        %v1306 = vxor.u32 %v1305, 2147483648
        %v1307 = vsel %vm1224, %v1306, %v1305
        %v1308 = vsub.s32 4, %v1284
        %v1309 = vsel %vm1224, %v1308, %v1284
        %v1310 = vsel %vm1223, %v272, %v1307
        %v1311 = vsel %vm1223, 0, %v1309
        %v1312 = vcosq.f32.pop %v1310
        %v1313 = vsinq.f32.pop %v1310
        %vm1314 = vweird.f32 %v272
        %v1315 = vand.u32 %v1311, 3
        %vm1316 = vcmp.lt.s32.totalorder %v1315, 2
        %vm1317 = vcmp.eq.s32.totalorder %v1315, 0
        %v1318 = vxor.u32 %v1313, 2147483648
        %v1319 = vsel %vm1317, %v1312, %v1318
        %vm1320 = vcmp.eq.s32.totalorder %v1315, 2
        %v1321 = vxor.u32 %v1312, 2147483648
        %v1322 = vsel %vm1320, %v1321, %v1313
        %v1323 = vsel %vm1316, %v1319, %v1322
        %v1324 = vsel %vm1314, nan, %v1323
        %v1325 = vand.u32 2147483647, %v273
        %vm1326 = vcmp.le.f32.partialorder %v1325, 0.7853982
        %vm1327 = vcmp.lt.s32.totalorder %v273, 0
        %v1328 = vand.u32 %v273, 2139095040
        %v1329 = vshrl.u32 %v1328, 23
        %v1330 = vsub.s32 %v1329, 127
        %v1331 = vand.u32 2147483647, %v273
        %v1332 = vand.u32 %v1331, 8388607
        %v1333 = vor.u32 %v1332, 8388608
        %v1334 = vsub.s32 0, %v1333
        %v1335 = vadd.s32 %v1330, 1
        %vm1336 = vcmp.gt.s32.totalorder %v1335, 0
        %v1337 = vsel %vm1336, %v1335, 0
        %v1338 = vshrl.u32 %v1337, 5
        %v1339 = vand.u32 %v1337, 31
        %v1340 = vsub.s32 32, %v1339
        %v1341 = vshrl.u32 683565275, %v1340
        %v1342 = vshll.u32 683565275, %v1339
        %v1343 = vshrl.u32 2475754826, %v1340
        %v1344 = vor.u32 %v1342, %v1343
        %v1345 = vshll.u32 2475754826, %v1339
        %v1346 = vshrl.u32 2131351028, %v1340
        %v1347 = vor.u32 %v1345, %v1346
        %v1348 = vshll.u32 2131351028, %v1339
        %v1349 = vshrl.u32 2102212464, %v1340
        %v1350 = vor.u32 %v1348, %v1349
        %v1351 = vshll.u32 2102212464, %v1339
        %v1352 = vshrl.u32 920167782, %v1340
        %v1353 = vor.u32 %v1351, %v1352
        %v1354 = vshll.u32 920167782, %v1339
        %v1355 = vshrl.u32 1326507024, %v1340
        %v1356 = vor.u32 %v1354, %v1355
        %vm1357 = vcmp.lt.s32.totalorder %v1338, 1
        %vm1358 = vcmp.lt.s32.totalorder %v1338, 2
        %vm1359 = vcmp.lt.s32.totalorder %v1338, 3
        %vm1360 = vcmp.lt.s32.totalorder %v1338, 4
        %v1361 = vsel %vm1357, %v1341, %v1344
        %v1362 = vsel %vm1360, %v1350, 2102212464
        %v1363 = vsel %vm1359, %v1347, %v1362
        %v1364 = vsel %vm1358, %v1361, %v1363
        %v1365 = vsel %vm1357, %v1344, %v1347
        %v1366 = vsel %vm1360, %v1353, 920167782
        %v1367 = vsel %vm1359, %v1350, %v1366
        %v1368 = vsel %vm1358, %v1365, %v1367
        %v1369 = vsel %vm1357, %v1347, %v1350
        %v1370 = vsel %vm1360, %v1356, 1326507024
        %v1371 = vsel %vm1359, %v1353, %v1370
        %v1372 = vsel %vm1358, %v1369, %v1371
        %v1373 = vshll.u32 %v1333, 8
        %v1374 = vmul.u32.u64.compose %v1373, %v1372
        %v1375 = vextract.low.u32 %v1374
        %v1376 = vextract.high.u32 %v1374
        %v1377 = vmul.u32.u64.compose %v1373, %v1368
        %v1378 = vextract.low.u32 %v1377
        %v1379 = vextract.high.u32 %v1377
        %v1380 = vmul.u32 %v1373, %v1364
        %v1381 = vadd.s32 %v1376, %v1378
        %vm1382 = vc.u32 %v1376, %v1378
        %v1383 = vadd.s32 %v1379, 1
        %v1384 = vsel %vm1382, %v1383, %v1379
        %v1385 = vadd.s32 %v1380, %v1384
        %v1386 = vadd.s32 %v1385, 536870912
        %v1387 = vshrl.u32 %v1386, 30
        %v1388 = vshll.u32 %v1387, 30
        %v1389 = vsub.s32 %v1385, %v1388
        %vm1390 = vcmp.lt.s32.totalorder %v1389, 0
        %v1391 = vsub.s32 0, %v1389
        %v1392 = vsel %vm1390, %v1391, %v1389
        %v1393 = vclz %v1392
        %v1394 = vsub.s32 %v1393, 2
        %vm1395 = vcmp.gt.s32.totalorder 0, %v1394
        %v1396 = vsel %vm1395, 0, %v1394
        %v1397 = vsub.s32 32, %v1396
        %v1398 = vshll.u32 %v1389, %v1396
        %v1399 = vshrl.u32 %v1381, %v1397
        %v1400 = vor.u32 %v1398, %v1399
        %v1401 = vsub.s32 4294967266, %v1396
        %v1402 = vadd.s32 %v1401, 127
        %v1403 = vshll.u32 %v1402, 23
        %v1404 = vor.u32 4788187, %v1403
        %v1405 = vand.u32 2147483647, %v1404
        %v1407 = vcvt.s32.f32 %v1400
        %v1408 = vmul.f32 %v1407, %v1405
        %v1409 = vxor.u32 %v1408, 2147483648
        %v1410 = vsel %vm1327, %v1409, %v1408
        %v1411 = vsub.s32 4, %v1387
        %v1412 = vsel %vm1327, %v1411, %v1387
        %v1413 = vsel %vm1326, %v273, %v1410
        %v1414 = vsel %vm1326, 0, %v1412
        %v1415 = vcosq.f32.pop %v1413
        %v1416 = vsinq.f32.pop %v1413
        %vm1417 = vweird.f32 %v273
        %v1418 = vand.u32 %v1414, 3
        %vm1419 = vcmp.lt.s32.totalorder %v1418, 2
        %vm1420 = vcmp.eq.s32.totalorder %v1418, 0
        %v1421 = vxor.u32 %v1416, 2147483648
        %v1422 = vsel %vm1420, %v1415, %v1421
        %vm1423 = vcmp.eq.s32.totalorder %v1418, 2
        %v1424 = vxor.u32 %v1415, 2147483648
        %v1425 = vsel %vm1423, %v1424, %v1416
        %v1426 = vsel %vm1419, %v1422, %v1425
        %v1427 = vsel %vm1417, nan, %v1426
        %v1428 = vand.u32 2147483647, %v274
        %vm1429 = vcmp.le.f32.partialorder %v1428, 0.7853982
        %vm1430 = vcmp.lt.s32.totalorder %v274, 0
        %v1431 = vand.u32 %v274, 2139095040
        %v1432 = vshrl.u32 %v1431, 23
        %v1433 = vsub.s32 %v1432, 127
        %v1434 = vand.u32 2147483647, %v274
        %v1435 = vand.u32 %v1434, 8388607
        %v1436 = vor.u32 %v1435, 8388608
        %v1437 = vsub.s32 0, %v1436
        %v1438 = vadd.s32 %v1433, 1
        %vm1439 = vcmp.gt.s32.totalorder %v1438, 0
        %v1440 = vsel %vm1439, %v1438, 0
        %v1441 = vshrl.u32 %v1440, 5
        %v1442 = vand.u32 %v1440, 31
        %v1443 = vsub.s32 32, %v1442
        %v1444 = vshrl.u32 683565275, %v1443
        %v1445 = vshll.u32 683565275, %v1442
        %v1446 = vshrl.u32 2475754826, %v1443
        %v1447 = vor.u32 %v1445, %v1446
        %v1448 = vshll.u32 2475754826, %v1442
        %v1449 = vshrl.u32 2131351028, %v1443
        %v1450 = vor.u32 %v1448, %v1449
        %v1451 = vshll.u32 2131351028, %v1442
        %v1452 = vshrl.u32 2102212464, %v1443
        %v1453 = vor.u32 %v1451, %v1452
        %v1454 = vshll.u32 2102212464, %v1442
        %v1455 = vshrl.u32 920167782, %v1443
        %v1456 = vor.u32 %v1454, %v1455
        %v1457 = vshll.u32 920167782, %v1442
        %v1458 = vshrl.u32 1326507024, %v1443
        %v1459 = vor.u32 %v1457, %v1458
        %vm1460 = vcmp.lt.s32.totalorder %v1441, 1
        %vm1461 = vcmp.lt.s32.totalorder %v1441, 2
        %vm1462 = vcmp.lt.s32.totalorder %v1441, 3
        %vm1463 = vcmp.lt.s32.totalorder %v1441, 4
        %v1464 = vsel %vm1460, %v1444, %v1447
        %v1465 = vsel %vm1463, %v1453, 2102212464
        %v1466 = vsel %vm1462, %v1450, %v1465
        %v1467 = vsel %vm1461, %v1464, %v1466
        %v1468 = vsel %vm1460, %v1447, %v1450
        %v1469 = vsel %vm1463, %v1456, 920167782
        %v1470 = vsel %vm1462, %v1453, %v1469
        %v1471 = vsel %vm1461, %v1468, %v1470
        %v1472 = vsel %vm1460, %v1450, %v1453
        %v1473 = vsel %vm1463, %v1459, 1326507024
        %v1474 = vsel %vm1462, %v1456, %v1473
        %v1475 = vsel %vm1461, %v1472, %v1474
        %v1476 = vshll.u32 %v1436, 8
        %v1477 = vmul.u32.u64.compose %v1476, %v1475
        %v1478 = vextract.low.u32 %v1477
        %v1479 = vextract.high.u32 %v1477
        %v1480 = vmul.u32.u64.compose %v1476, %v1471
        %v1481 = vextract.low.u32 %v1480
        %v1482 = vextract.high.u32 %v1480
        %v1483 = vmul.u32 %v1476, %v1467
        %v1484 = vadd.s32 %v1479, %v1481
        %vm1485 = vc.u32 %v1479, %v1481
        %v1486 = vadd.s32 %v1482, 1
        %v1487 = vsel %vm1485, %v1486, %v1482
        %v1488 = vadd.s32 %v1483, %v1487
        %v1489 = vadd.s32 %v1488, 536870912
        %v1490 = vshrl.u32 %v1489, 30
        %v1491 = vshll.u32 %v1490, 30
        %v1492 = vsub.s32 %v1488, %v1491
        %vm1493 = vcmp.lt.s32.totalorder %v1492, 0
        %v1494 = vsub.s32 0, %v1492
        %v1495 = vsel %vm1493, %v1494, %v1492
        %v1496 = vclz %v1495
        %v1497 = vsub.s32 %v1496, 2
        %vm1498 = vcmp.gt.s32.totalorder 0, %v1497
        %v1499 = vsel %vm1498, 0, %v1497
        %v1500 = vsub.s32 32, %v1499
        %v1501 = vshll.u32 %v1492, %v1499
        %v1502 = vshrl.u32 %v1484, %v1500
        %v1503 = vor.u32 %v1501, %v1502
        %v1504 = vsub.s32 4294967266, %v1499
        %v1505 = vadd.s32 %v1504, 127
        %v1506 = vshll.u32 %v1505, 23
        %v1507 = vor.u32 4788187, %v1506
        %v1508 = vand.u32 2147483647, %v1507
        %v1510 = vcvt.s32.f32 %v1503
        %v1511 = vmul.f32 %v1510, %v1508
        %v1512 = vxor.u32 %v1511, 2147483648
        %v1513 = vsel %vm1430, %v1512, %v1511
        %v1514 = vsub.s32 4, %v1490
        %v1515 = vsel %vm1430, %v1514, %v1490
        %v1516 = vsel %vm1429, %v274, %v1513
        %v1517 = vsel %vm1429, 0, %v1515
        %v1518 = vcosq.f32.pop %v1516
        %v1519 = vsinq.f32.pop %v1516
        %vm1520 = vweird.f32 %v274
        %v1521 = vand.u32 %v1517, 3
        %vm1522 = vcmp.lt.s32.totalorder %v1521, 2
        %vm1523 = vcmp.eq.s32.totalorder %v1521, 0
        %v1524 = vxor.u32 %v1519, 2147483648
        %v1525 = vsel %vm1523, %v1518, %v1524
        %vm1526 = vcmp.eq.s32.totalorder %v1521, 2
        %v1527 = vxor.u32 %v1518, 2147483648
        %v1528 = vsel %vm1526, %v1527, %v1519
        %v1529 = vsel %vm1522, %v1525, %v1528
        %v1530 = vsel %vm1520, nan, %v1529
        %v1531 = vand.u32 2147483647, %v275
        %vm1532 = vcmp.le.f32.partialorder %v1531, 0.7853982
        %vm1533 = vcmp.lt.s32.totalorder %v275, 0
        %v1534 = vand.u32 %v275, 2139095040
        %v1535 = vshrl.u32 %v1534, 23
        %v1536 = vsub.s32 %v1535, 127
        %v1537 = vand.u32 2147483647, %v275
        %v1538 = vand.u32 %v1537, 8388607
        %v1539 = vor.u32 %v1538, 8388608
        %v1540 = vsub.s32 0, %v1539
        %v1541 = vadd.s32 %v1536, 1
        %vm1542 = vcmp.gt.s32.totalorder %v1541, 0
        %v1543 = vsel %vm1542, %v1541, 0
        %v1544 = vshrl.u32 %v1543, 5
        %v1545 = vand.u32 %v1543, 31
        %v1546 = vsub.s32 32, %v1545
        %v1547 = vshrl.u32 683565275, %v1546
        %v1548 = vshll.u32 683565275, %v1545
        %v1549 = vshrl.u32 2475754826, %v1546
        %v1550 = vor.u32 %v1548, %v1549
        %v1551 = vshll.u32 2475754826, %v1545
        %v1552 = vshrl.u32 2131351028, %v1546
        %v1553 = vor.u32 %v1551, %v1552
        %v1554 = vshll.u32 2131351028, %v1545
        %v1555 = vshrl.u32 2102212464, %v1546
        %v1556 = vor.u32 %v1554, %v1555
        %v1557 = vshll.u32 2102212464, %v1545
        %v1558 = vshrl.u32 920167782, %v1546
        %v1559 = vor.u32 %v1557, %v1558
        %v1560 = vshll.u32 920167782, %v1545
        %v1561 = vshrl.u32 1326507024, %v1546
        %v1562 = vor.u32 %v1560, %v1561
        %vm1563 = vcmp.lt.s32.totalorder %v1544, 1
        %vm1564 = vcmp.lt.s32.totalorder %v1544, 2
        %vm1565 = vcmp.lt.s32.totalorder %v1544, 3
        %vm1566 = vcmp.lt.s32.totalorder %v1544, 4
        %v1567 = vsel %vm1563, %v1547, %v1550
        %v1568 = vsel %vm1566, %v1556, 2102212464
        %v1569 = vsel %vm1565, %v1553, %v1568
        %v1570 = vsel %vm1564, %v1567, %v1569
        %v1571 = vsel %vm1563, %v1550, %v1553
        %v1572 = vsel %vm1566, %v1559, 920167782
        %v1573 = vsel %vm1565, %v1556, %v1572
        %v1574 = vsel %vm1564, %v1571, %v1573
        %v1575 = vsel %vm1563, %v1553, %v1556
        %v1576 = vsel %vm1566, %v1562, 1326507024
        %v1577 = vsel %vm1565, %v1559, %v1576
        %v1578 = vsel %vm1564, %v1575, %v1577
        %v1579 = vshll.u32 %v1539, 8
        %v1580 = vmul.u32.u64.compose %v1579, %v1578
        %v1581 = vextract.low.u32 %v1580
        %v1582 = vextract.high.u32 %v1580
        %v1583 = vmul.u32.u64.compose %v1579, %v1574
        %v1584 = vextract.low.u32 %v1583
        %v1585 = vextract.high.u32 %v1583
        %v1586 = vmul.u32 %v1579, %v1570
        %v1587 = vadd.s32 %v1582, %v1584
        %vm1588 = vc.u32 %v1582, %v1584
        %v1589 = vadd.s32 %v1585, 1
        %v1590 = vsel %vm1588, %v1589, %v1585
        %v1591 = vadd.s32 %v1586, %v1590
        %v1592 = vadd.s32 %v1591, 536870912
        %v1593 = vshrl.u32 %v1592, 30
        %v1594 = vshll.u32 %v1593, 30
        %v1595 = vsub.s32 %v1591, %v1594
        %vm1596 = vcmp.lt.s32.totalorder %v1595, 0
        %v1597 = vsub.s32 0, %v1595
        %v1598 = vsel %vm1596, %v1597, %v1595
        %v1599 = vclz %v1598
        %v1600 = vsub.s32 %v1599, 2
        %vm1601 = vcmp.gt.s32.totalorder 0, %v1600
        %v1602 = vsel %vm1601, 0, %v1600
        %v1603 = vsub.s32 32, %v1602
        %v1604 = vshll.u32 %v1595, %v1602
        %v1605 = vshrl.u32 %v1587, %v1603
        %v1606 = vor.u32 %v1604, %v1605
        %v1607 = vsub.s32 4294967266, %v1602
        %v1608 = vadd.s32 %v1607, 127
        %v1609 = vshll.u32 %v1608, 23
        %v1610 = vor.u32 4788187, %v1609
        %v1611 = vand.u32 2147483647, %v1610
        %v1613 = vcvt.s32.f32 %v1606
        %v1614 = vmul.f32 %v1613, %v1611
        %v1615 = vxor.u32 %v1614, 2147483648
        %v1616 = vsel %vm1533, %v1615, %v1614
        %v1617 = vsub.s32 4, %v1593
        %v1618 = vsel %vm1533, %v1617, %v1593
        %v1619 = vsel %vm1532, %v275, %v1616
        %v1620 = vsel %vm1532, 0, %v1618
        %v1621 = vcosq.f32.pop %v1619
        %v1622 = vsinq.f32.pop %v1619
        %vm1623 = vweird.f32 %v275
        %v1624 = vand.u32 %v1620, 3
        %vm1625 = vcmp.lt.s32.totalorder %v1624, 2
        %vm1626 = vcmp.eq.s32.totalorder %v1624, 0
        %v1627 = vxor.u32 %v1622, 2147483648
        %v1628 = vsel %vm1626, %v1621, %v1627
        %vm1629 = vcmp.eq.s32.totalorder %v1624, 2
        %v1630 = vxor.u32 %v1621, 2147483648
        %v1631 = vsel %vm1629, %v1630, %v1622
        %v1632 = vsel %vm1625, %v1628, %v1631
        %v1633 = vsel %vm1623, nan, %v1632
        %v1634 = vand.u32 2147483647, %v276
        %vm1635 = vcmp.le.f32.partialorder %v1634, 0.7853982
        %vm1636 = vcmp.lt.s32.totalorder %v276, 0
        %v1637 = vand.u32 %v276, 2139095040
        %v1638 = vshrl.u32 %v1637, 23
        %v1639 = vsub.s32 %v1638, 127
        %v1640 = vand.u32 2147483647, %v276
        %v1641 = vand.u32 %v1640, 8388607
        %v1642 = vor.u32 %v1641, 8388608
        %v1643 = vsub.s32 0, %v1642
        %v1644 = vadd.s32 %v1639, 1
        %vm1645 = vcmp.gt.s32.totalorder %v1644, 0
        %v1646 = vsel %vm1645, %v1644, 0
        %v1647 = vshrl.u32 %v1646, 5
        %v1648 = vand.u32 %v1646, 31
        %v1649 = vsub.s32 32, %v1648
        %v1650 = vshrl.u32 683565275, %v1649
        %v1651 = vshll.u32 683565275, %v1648
        %v1652 = vshrl.u32 2475754826, %v1649
        %v1653 = vor.u32 %v1651, %v1652
        %v1654 = vshll.u32 2475754826, %v1648
        %v1655 = vshrl.u32 2131351028, %v1649
        %v1656 = vor.u32 %v1654, %v1655
        %v1657 = vshll.u32 2131351028, %v1648
        %v1658 = vshrl.u32 2102212464, %v1649
        %v1659 = vor.u32 %v1657, %v1658
        %v1660 = vshll.u32 2102212464, %v1648
        %v1661 = vshrl.u32 920167782, %v1649
        %v1662 = vor.u32 %v1660, %v1661
        %v1663 = vshll.u32 920167782, %v1648
        %v1664 = vshrl.u32 1326507024, %v1649
        %v1665 = vor.u32 %v1663, %v1664
        %vm1666 = vcmp.lt.s32.totalorder %v1647, 1
        %vm1667 = vcmp.lt.s32.totalorder %v1647, 2
        %vm1668 = vcmp.lt.s32.totalorder %v1647, 3
        %vm1669 = vcmp.lt.s32.totalorder %v1647, 4
        %v1670 = vsel %vm1666, %v1650, %v1653
        %v1671 = vsel %vm1669, %v1659, 2102212464
        %v1672 = vsel %vm1668, %v1656, %v1671
        %v1673 = vsel %vm1667, %v1670, %v1672
        %v1674 = vsel %vm1666, %v1653, %v1656
        %v1675 = vsel %vm1669, %v1662, 920167782
        %v1676 = vsel %vm1668, %v1659, %v1675
        %v1677 = vsel %vm1667, %v1674, %v1676
        %v1678 = vsel %vm1666, %v1656, %v1659
        %v1679 = vsel %vm1669, %v1665, 1326507024
        %v1680 = vsel %vm1668, %v1662, %v1679
        %v1681 = vsel %vm1667, %v1678, %v1680
        %v1682 = vshll.u32 %v1642, 8
        %v1683 = vmul.u32.u64.compose %v1682, %v1681
        %v1684 = vextract.low.u32 %v1683
        %v1685 = vextract.high.u32 %v1683
        %v1686 = vmul.u32.u64.compose %v1682, %v1677
        %v1687 = vextract.low.u32 %v1686
        %v1688 = vextract.high.u32 %v1686
        %v1689 = vmul.u32 %v1682, %v1673
        %v1690 = vadd.s32 %v1685, %v1687
        %vm1691 = vc.u32 %v1685, %v1687
        %v1692 = vadd.s32 %v1688, 1
        %v1693 = vsel %vm1691, %v1692, %v1688
        %v1694 = vadd.s32 %v1689, %v1693
        %v1695 = vadd.s32 %v1694, 536870912
        %v1696 = vshrl.u32 %v1695, 30
        %v1697 = vshll.u32 %v1696, 30
        %v1698 = vsub.s32 %v1694, %v1697
        %vm1699 = vcmp.lt.s32.totalorder %v1698, 0
        %v1700 = vsub.s32 0, %v1698
        %v1701 = vsel %vm1699, %v1700, %v1698
        %v1702 = vclz %v1701
        %v1703 = vsub.s32 %v1702, 2
        %vm1704 = vcmp.gt.s32.totalorder 0, %v1703
        %v1705 = vsel %vm1704, 0, %v1703
        %v1706 = vsub.s32 32, %v1705
        %v1707 = vshll.u32 %v1698, %v1705
        %v1708 = vshrl.u32 %v1690, %v1706
        %v1709 = vor.u32 %v1707, %v1708
        %v1710 = vsub.s32 4294967266, %v1705
        %v1711 = vadd.s32 %v1710, 127
        %v1712 = vshll.u32 %v1711, 23
        %v1713 = vor.u32 4788187, %v1712
        %v1714 = vand.u32 2147483647, %v1713
        %v1716 = vcvt.s32.f32 %v1709
        %v1717 = vmul.f32 %v1716, %v1714
        %v1718 = vxor.u32 %v1717, 2147483648
        %v1719 = vsel %vm1636, %v1718, %v1717
        %v1720 = vsub.s32 4, %v1696
        %v1721 = vsel %vm1636, %v1720, %v1696
        %v1722 = vsel %vm1635, %v276, %v1719
        %v1723 = vsel %vm1635, 0, %v1721
        %v1724 = vcosq.f32.pop %v1722
        %v1725 = vsinq.f32.pop %v1722
        %vm1726 = vweird.f32 %v276
        %v1727 = vand.u32 %v1723, 3
        %vm1728 = vcmp.lt.s32.totalorder %v1727, 2
        %vm1729 = vcmp.eq.s32.totalorder %v1727, 0
        %v1730 = vxor.u32 %v1725, 2147483648
        %v1731 = vsel %vm1729, %v1724, %v1730
        %vm1732 = vcmp.eq.s32.totalorder %v1727, 2
        %v1733 = vxor.u32 %v1724, 2147483648
        %v1734 = vsel %vm1732, %v1733, %v1725
        %v1735 = vsel %vm1728, %v1731, %v1734
        %v1736 = vsel %vm1726, nan, %v1735
        %v1737 = vand.u32 2147483647, %v277
        %vm1738 = vcmp.le.f32.partialorder %v1737, 0.7853982
        %vm1739 = vcmp.lt.s32.totalorder %v277, 0
        %v1740 = vand.u32 %v277, 2139095040
        %v1741 = vshrl.u32 %v1740, 23
        %v1742 = vsub.s32 %v1741, 127
        %v1743 = vand.u32 2147483647, %v277
        %v1744 = vand.u32 %v1743, 8388607
        %v1745 = vor.u32 %v1744, 8388608
        %v1746 = vsub.s32 0, %v1745
        %v1747 = vadd.s32 %v1742, 1
        %vm1748 = vcmp.gt.s32.totalorder %v1747, 0
        %v1749 = vsel %vm1748, %v1747, 0
        %v1750 = vshrl.u32 %v1749, 5
        %v1751 = vand.u32 %v1749, 31
        %v1752 = vsub.s32 32, %v1751
        %v1753 = vshrl.u32 683565275, %v1752
        %v1754 = vshll.u32 683565275, %v1751
        %v1755 = vshrl.u32 2475754826, %v1752
        %v1756 = vor.u32 %v1754, %v1755
        %v1757 = vshll.u32 2475754826, %v1751
        %v1758 = vshrl.u32 2131351028, %v1752
        %v1759 = vor.u32 %v1757, %v1758
        %v1760 = vshll.u32 2131351028, %v1751
        %v1761 = vshrl.u32 2102212464, %v1752
        %v1762 = vor.u32 %v1760, %v1761
        %v1763 = vshll.u32 2102212464, %v1751
        %v1764 = vshrl.u32 920167782, %v1752
        %v1765 = vor.u32 %v1763, %v1764
        %v1766 = vshll.u32 920167782, %v1751
        %v1767 = vshrl.u32 1326507024, %v1752
        %v1768 = vor.u32 %v1766, %v1767
        %vm1769 = vcmp.lt.s32.totalorder %v1750, 1
        %vm1770 = vcmp.lt.s32.totalorder %v1750, 2
        %vm1771 = vcmp.lt.s32.totalorder %v1750, 3
        %vm1772 = vcmp.lt.s32.totalorder %v1750, 4
        %v1773 = vsel %vm1769, %v1753, %v1756
        %v1774 = vsel %vm1772, %v1762, 2102212464
        %v1775 = vsel %vm1771, %v1759, %v1774
        %v1776 = vsel %vm1770, %v1773, %v1775
        %v1777 = vsel %vm1769, %v1756, %v1759
        %v1778 = vsel %vm1772, %v1765, 920167782
        %v1779 = vsel %vm1771, %v1762, %v1778
        %v1780 = vsel %vm1770, %v1777, %v1779
        %v1781 = vsel %vm1769, %v1759, %v1762
        %v1782 = vsel %vm1772, %v1768, 1326507024
        %v1783 = vsel %vm1771, %v1765, %v1782
        %v1784 = vsel %vm1770, %v1781, %v1783
        %v1785 = vshll.u32 %v1745, 8
        %v1786 = vmul.u32.u64.compose %v1785, %v1784
        %v1787 = vextract.low.u32 %v1786
        %v1788 = vextract.high.u32 %v1786
        %v1789 = vmul.u32.u64.compose %v1785, %v1780
        %v1790 = vextract.low.u32 %v1789
        %v1791 = vextract.high.u32 %v1789
        %v1792 = vmul.u32 %v1785, %v1776
        %v1793 = vadd.s32 %v1788, %v1790
        %vm1794 = vc.u32 %v1788, %v1790
        %v1795 = vadd.s32 %v1791, 1
        %v1796 = vsel %vm1794, %v1795, %v1791
        %v1797 = vadd.s32 %v1792, %v1796
        %v1798 = vadd.s32 %v1797, 536870912
        %v1799 = vshrl.u32 %v1798, 30
        %v1800 = vshll.u32 %v1799, 30
        %v1801 = vsub.s32 %v1797, %v1800
        %vm1802 = vcmp.lt.s32.totalorder %v1801, 0
        %v1803 = vsub.s32 0, %v1801
        %v1804 = vsel %vm1802, %v1803, %v1801
        %v1805 = vclz %v1804
        %v1806 = vsub.s32 %v1805, 2
        %vm1807 = vcmp.gt.s32.totalorder 0, %v1806
        %v1808 = vsel %vm1807, 0, %v1806
        %v1809 = vsub.s32 32, %v1808
        %v1810 = vshll.u32 %v1801, %v1808
        %v1811 = vshrl.u32 %v1793, %v1809
        %v1812 = vor.u32 %v1810, %v1811
        %v1813 = vsub.s32 4294967266, %v1808
        %v1814 = vadd.s32 %v1813, 127
        %v1815 = vshll.u32 %v1814, 23
        %v1816 = vor.u32 4788187, %v1815
        %v1817 = vand.u32 2147483647, %v1816
        %v1819 = vcvt.s32.f32 %v1812
        %v1820 = vmul.f32 %v1819, %v1817
        %v1821 = vxor.u32 %v1820, 2147483648
        %v1822 = vsel %vm1739, %v1821, %v1820
        %v1823 = vsub.s32 4, %v1799
        %v1824 = vsel %vm1739, %v1823, %v1799
        %v1825 = vsel %vm1738, %v277, %v1822
        %v1826 = vsel %vm1738, 0, %v1824
        %v1827 = vcosq.f32.pop %v1825
        %v1828 = vsinq.f32.pop %v1825
        %vm1829 = vweird.f32 %v277
        %v1830 = vand.u32 %v1826, 3
        %vm1831 = vcmp.lt.s32.totalorder %v1830, 2
        %vm1832 = vcmp.eq.s32.totalorder %v1830, 0
        %v1833 = vxor.u32 %v1828, 2147483648
        %v1834 = vsel %vm1832, %v1827, %v1833
        %vm1835 = vcmp.eq.s32.totalorder %v1830, 2
        %v1836 = vxor.u32 %v1827, 2147483648
        %v1837 = vsel %vm1835, %v1836, %v1828
        %v1838 = vsel %vm1831, %v1834, %v1837
        %v1839 = vsel %vm1829, nan, %v1838
        %v1840 = vand.u32 2147483647, %v278
        %vm1841 = vcmp.le.f32.partialorder %v1840, 0.7853982
        %vm1842 = vcmp.lt.s32.totalorder %v278, 0
        %v1843 = vand.u32 %v278, 2139095040
        %v1844 = vshrl.u32 %v1843, 23
        %v1845 = vsub.s32 %v1844, 127
        %v1846 = vand.u32 2147483647, %v278
        %v1847 = vand.u32 %v1846, 8388607
        %v1848 = vor.u32 %v1847, 8388608
        %v1849 = vsub.s32 0, %v1848
        %v1850 = vadd.s32 %v1845, 1
        %vm1851 = vcmp.gt.s32.totalorder %v1850, 0
        %v1852 = vsel %vm1851, %v1850, 0
        %v1853 = vshrl.u32 %v1852, 5
        %v1854 = vand.u32 %v1852, 31
        %v1855 = vsub.s32 32, %v1854
        %v1856 = vshrl.u32 683565275, %v1855
        %v1857 = vshll.u32 683565275, %v1854
        %v1858 = vshrl.u32 2475754826, %v1855
        %v1859 = vor.u32 %v1857, %v1858
        %v1860 = vshll.u32 2475754826, %v1854
        %v1861 = vshrl.u32 2131351028, %v1855
        %v1862 = vor.u32 %v1860, %v1861
        %v1863 = vshll.u32 2131351028, %v1854
        %v1864 = vshrl.u32 2102212464, %v1855
        %v1865 = vor.u32 %v1863, %v1864
        %v1866 = vshll.u32 2102212464, %v1854
        %v1867 = vshrl.u32 920167782, %v1855
        %v1868 = vor.u32 %v1866, %v1867
        %v1869 = vshll.u32 920167782, %v1854
        %v1870 = vshrl.u32 1326507024, %v1855
        %v1871 = vor.u32 %v1869, %v1870
        %vm1872 = vcmp.lt.s32.totalorder %v1853, 1
        %vm1873 = vcmp.lt.s32.totalorder %v1853, 2
        %vm1874 = vcmp.lt.s32.totalorder %v1853, 3
        %vm1875 = vcmp.lt.s32.totalorder %v1853, 4
        %v1876 = vsel %vm1872, %v1856, %v1859
        %v1877 = vsel %vm1875, %v1865, 2102212464
        %v1878 = vsel %vm1874, %v1862, %v1877
        %v1879 = vsel %vm1873, %v1876, %v1878
        %v1880 = vsel %vm1872, %v1859, %v1862
        %v1881 = vsel %vm1875, %v1868, 920167782
        %v1882 = vsel %vm1874, %v1865, %v1881
        %v1883 = vsel %vm1873, %v1880, %v1882
        %v1884 = vsel %vm1872, %v1862, %v1865
        %v1885 = vsel %vm1875, %v1871, 1326507024
        %v1886 = vsel %vm1874, %v1868, %v1885
        %v1887 = vsel %vm1873, %v1884, %v1886
        %v1888 = vshll.u32 %v1848, 8
        %v1889 = vmul.u32.u64.compose %v1888, %v1887
        %v1890 = vextract.low.u32 %v1889
        %v1891 = vextract.high.u32 %v1889
        %v1892 = vmul.u32.u64.compose %v1888, %v1883
        %v1893 = vextract.low.u32 %v1892
        %v1894 = vextract.high.u32 %v1892
        %v1895 = vmul.u32 %v1888, %v1879
        %v1896 = vadd.s32 %v1891, %v1893
        %vm1897 = vc.u32 %v1891, %v1893
        %v1898 = vadd.s32 %v1894, 1
        %v1899 = vsel %vm1897, %v1898, %v1894
        %v1900 = vadd.s32 %v1895, %v1899
        %v1901 = vadd.s32 %v1900, 536870912
        %v1902 = vshrl.u32 %v1901, 30
        %v1903 = vshll.u32 %v1902, 30
        %v1904 = vsub.s32 %v1900, %v1903
        %vm1905 = vcmp.lt.s32.totalorder %v1904, 0
        %v1906 = vsub.s32 0, %v1904
        %v1907 = vsel %vm1905, %v1906, %v1904
        %v1908 = vclz %v1907
        %v1909 = vsub.s32 %v1908, 2
        %vm1910 = vcmp.gt.s32.totalorder 0, %v1909
        %v1911 = vsel %vm1910, 0, %v1909
        %v1912 = vsub.s32 32, %v1911
        %v1913 = vshll.u32 %v1904, %v1911
        %v1914 = vshrl.u32 %v1896, %v1912
        %v1915 = vor.u32 %v1913, %v1914
        %v1916 = vsub.s32 4294967266, %v1911
        %v1917 = vadd.s32 %v1916, 127
        %v1918 = vshll.u32 %v1917, 23
        %v1919 = vor.u32 4788187, %v1918
        %v1920 = vand.u32 2147483647, %v1919
        %v1922 = vcvt.s32.f32 %v1915
        %v1923 = vmul.f32 %v1922, %v1920
        %v1924 = vxor.u32 %v1923, 2147483648
        %v1925 = vsel %vm1842, %v1924, %v1923
        %v1926 = vsub.s32 4, %v1902
        %v1927 = vsel %vm1842, %v1926, %v1902
        %v1928 = vsel %vm1841, %v278, %v1925
        %v1929 = vsel %vm1841, 0, %v1927
        %v1930 = vcosq.f32.pop %v1928
        %v1931 = vsinq.f32.pop %v1928
        %vm1932 = vweird.f32 %v278
        %v1933 = vand.u32 %v1929, 3
        %vm1934 = vcmp.lt.s32.totalorder %v1933, 2
        %vm1935 = vcmp.eq.s32.totalorder %v1933, 0
        %v1936 = vxor.u32 %v1931, 2147483648
        %v1937 = vsel %vm1935, %v1930, %v1936
        %vm1938 = vcmp.eq.s32.totalorder %v1933, 2
        %v1939 = vxor.u32 %v1930, 2147483648
        %v1940 = vsel %vm1938, %v1939, %v1931
        %v1941 = vsel %vm1934, %v1937, %v1940
        %v1942 = vsel %vm1932, nan, %v1941
        %s1943 = scalar_lea.vmem %s167, 64 [#allocation2]
        %1944 = vst [vmem:[%s1943] sm:$0xff] %v1221
        %1945 = vst [vmem:[%s1943 + $0x8] sm:$0xff] %v1324
        %1946 = vst [vmem:[%s1943 + $0x10] sm:$0xff] %v1427
        %1947 = vst [vmem:[%s1943 + $0x18] sm:$0xff] %v1530
        %1948 = vst [vmem:[%s1943 + $0x20] sm:$0xff] %v1633
        %1949 = vst [vmem:[%s1943 + $0x28] sm:$0xff] %v1736
        %1950 = vst [vmem:[%s1943 + $0x30] sm:$0xff] %v1839
        %1951 = vst [vmem:[%s1943 + $0x38] sm:$0xff] %v1942
        %s1952 = sand.u32 %s90, 1
        %s1953 = scalar_lea.sflag [#allocation3], %s1952
        %s1954 = sand.u32 %s90, 1
        %s1955 = smul.addr %s1954, 128
        %s1956 = scalar_lea.vmem [#allocation2], %s1955
        // Predicated region
        $region29: #{tpu_custom_call.1} parent=27 // pred_check
          %p1957 = pneg %p100
        $region30: #{tpu_custom_call.1} parent=27 // pred_check_branch
          %1959 = sbr.rel (%p1957) target = $region32
        $region31: #{tpu_custom_call.1} parent=27 // pred_region
          #allocation5 [shape = 'u32[6]{0}', space=smem, size = 0x18, scoped, tag = 'DMA stride descriptor']
          %s1960 = smul.u32 4, %s20
          %s1961 = smul.u32 2, %s21
          %s1963 = ssub.s32 2048, 2048
          %1964 = vsyncadd %s1953, %s1963
          %s1965 = smul.addr %s1960, 2
          %s1966 = sadd.s32 %s1961, %s1965
          %s1967 = smul.addr %s1966, 128
          %s1968 = scalar_lea.hbm %s2, %s1967
          %s1970 = sshll.u32 1, 14
          %s1971 = sxor.u32 4294967295, %s1970
          %s1974 = sshll.u32 7, 18
          %s1975 = sxor.u32 4294967295, %s1974
          %s1976 = sand.u32 0, %s1975
          %s1978 = sor.u32 %s1976, 0
          %s1980 = sshll.u32 3, 24
          %s1981 = sxor.u32 4294967295, %s1980
          %s1982 = sand.u32 %s1978, %s1981
          %s1984 = sor.u32 %s1982, 0
          %s1985 = sshll.u32 %s1956, 4
          %s1986 = int_to_ptr.vmem [resolvable:$true] %s1985
          %1992 = sst [smem:[#allocation5]] 1024
          %s1993 = scalar_lea.smem [#allocation5], 1
          %1994 = sst [smem:[%s1993]] 2048
          %s1995 = scalar_lea.smem [#allocation5], 2
          %1996 = sst [smem:[%s1995]] 4
          %s1997 = scalar_lea.smem [#allocation5], 3
          %1998 = sst [smem:[%s1997]] 256
          %s1999 = scalar_lea.smem [#allocation5], 4
          %2000 = sst [smem:[%s1999]] 256
          %s2001 = scalar_lea.smem [#allocation5], 5
          %2002 = sst [smem:[%s2001]] 16
          %2004 = dma.general %s1986, 2048, %s1968, %s1953, [#allocation4], [#allocation5], %s1984, 0
        $region32: #{tpu_custom_call.1} parent=27 // pred_fallthru
          _
      $region28: #{tpu_custom_call.1} parent=5 // pred_fallthru
        _
      %p2005 = scmp.le.s32.totalorder 2, %s11
      // Predicated region
      $region33: #{tpu_custom_call.1} parent=5 // pred_check
        %p2006 = pneg %p2005
      $region34: #{tpu_custom_call.1} parent=5 // pred_check_branch
        %2008 = sbr.rel (%p2006) target = $region36
      $region35: #{tpu_custom_call.1} parent=5 // pred_region
        %s2009 = ssub.s32 %s11, 2
        // Predicated region
        $region37: #{tpu_custom_call.1} parent=35 // pred_check
          %p2010 = pneg %p106
        $region38: #{tpu_custom_call.1} parent=35 // pred_check_branch
          %2012 = sbr.rel (%p2010) target = $region40
        $region39: #{tpu_custom_call.1} parent=35 // pred_region
          %s2013 = sand.u32 %s91, 1
          %s2014 = scalar_lea.sflag [#allocation3], %s2013
          %s2015 = sand.u32 %s91, 1
          %s2016 = smul.addr %s2015, 128
          %s2017 = scalar_lea.vmem [#allocation2], %s2016
          %2018 = dma.done %s2014, 2048
        $region40: #{tpu_custom_call.1} parent=35 // pred_fallthru
          _
      $region36: #{tpu_custom_call.1} parent=5 // pred_fallthru
        _
    $region6: #{tpu_custom_call.1} parent=1 // loop_footer
      %s15 = sadd.s32 1, %s11
    $region7: #{tpu_custom_call.1} parent=1 // loop_footer_branch
      %10 = sbr.rel target = $region3
    $region8: #{tpu_custom_call.1} parent=1 // loop_exit
      _
    %2019 = vsyncpa [#allocation3], 1
    %s2020 = scalar_lea.sflag [#allocation3], 1
    %2021 = vsyncpa %s2020, 1

</llo_original>
